<compile_context>
chip_gen: v7x
topology: tpu7x:2x2x1
jax: 0.10.0
libtpu: 0.0.40
codegen_flags: <defaults>
</compile_context>

<pallas_src>
import functools
import math

import jax
import jax.numpy as jnp
from jax import lax
from jax.experimental import pallas as pl
from jax.experimental.pallas import tpu as pltpu

LANE = 128


def conv2d_out_dim(dim, kernel_size, padding=0, stride=1, dilation=1):
    return int(math.floor((dim + 2 * padding - dilation * (kernel_size - 1) - 1) / stride + 1))


def _round_up(x, m):
    return (x + m - 1) // m * m


# ------------------------------ fused kernel --------------------------------

def _fused_inverted_residual_kernel(*refs, stride, has_expand, bt, h, w, ho, wo):
    """expand(1x1) -> depthwise(3x3, stride) -> project(1x1) for one batch tile."""
    if has_expand:
        (x_ref, w_exp_ref, b_exp_ref, w_dw_ref, w_proj_ref, b_proj_ref, o_ref) = refs
    else:
        (x_ref, w_dw_ref, w_proj_ref, b_proj_ref, o_ref) = refs
        w_exp_ref = b_exp_ref = None

    c_hid = w_dw_ref.shape[-1]
    c_out = o_ref.shape[-1]

    dw_pack = w_dw_ref[...].astype(jnp.float32)       # (10, c_hid): 9 taps + bias
    taps = [dw_pack[k] for k in range(9)]             # each (c_hid,), row-major [dy][dx]
    b_dw = dw_pack[9]

    def expand(x2d):
        # 1x1 expand conv (BN folded into weights) + ReLU6, on the MXU.
        if has_expand:
            y = jnp.dot(x2d, w_exp_ref[...], preferred_element_type=jnp.float32)
            return jnp.clip(y + b_exp_ref[...].astype(jnp.float32), 0.0, 6.0)
        return x2d.astype(jnp.float32)

    if stride == 1:
        c_in = x_ref.shape[-1]
        x = x_ref[...]                                               # (bt, h, w, c_in)
        y = expand(x.reshape(bt * h * w, c_in)).reshape(bt, h, w, c_hid)

        # Column-shifted variants: sublane roll (XLU) + edge masks (no unaligned slices).
        col = lax.broadcasted_iota(jnp.int32, (w, c_hid), 0)
        mask_l = (col != 0).astype(jnp.float32)                      # kill wrapped col 0
        mask_r = (col != w - 1).astype(jnp.float32)                  # kill wrapped col w-1
        y_l = pltpu.roll(y, shift=1, axis=2) * mask_l                # y_l[.., x, :] = y[.., x-1, :]
        y_r = pltpu.roll(y, shift=w - 1, axis=2) * mask_r            # y_r[.., x, :] = y[.., x+1, :]

        # Row halo via zero rows on the major dim (contiguous copies, no relayout).
        zrow = jnp.zeros((bt, 1, w, c_hid), jnp.float32)
        col_vars = [jnp.concatenate([zrow, v, zrow], axis=1) for v in (y_l, y, y_r)]

        acc = jnp.zeros((bt, ho, wo, c_hid), jnp.float32)
        for dy in range(3):
            for dx in range(3):
                acc = acc + col_vars[dx][:, dy:dy + h] * taps[3 * dy + dx]
    else:
        # stride == 2: input arrives phase-split along rows: [ee | eo | oe | oo],
        # each plane is (hh, wh) = (h//2, w//2) = (ho, wo).  The 9 taps are
        # accumulated directly at output resolution.
        hh, wh = h // 2, w // 2
        c_in = x_ref.shape[-1]
        x = x_ref[...]                                               # (bt, 4*hh, wh, c_in)
        y = expand(x.reshape(bt * 4 * hh * wh, c_in)).reshape(bt, 4 * hh, wh, c_hid)
        p_ee = y[:, 0 * hh:1 * hh]
        p_eo = y[:, 1 * hh:2 * hh]
        p_oe = y[:, 2 * hh:3 * hh]
        p_oo = y[:, 3 * hh:4 * hh]

        col = lax.broadcasted_iota(jnp.int32, (wh, c_hid), 0)
        mask_l = (col != 0).astype(jnp.float32)
        p_eo_l = pltpu.roll(p_eo, shift=1, axis=2) * mask_l          # p_eo[., ox-1]
        p_oo_l = pltpu.roll(p_oo, shift=1, axis=2) * mask_l          # p_oo[., ox-1]

        zrow = jnp.zeros((bt, 1, wh, c_hid), jnp.float32)
        oe_p = jnp.concatenate([zrow, p_oe], axis=1)                 # [:, 0:hh] -> row oy-1
        oo_p = jnp.concatenate([zrow, p_oo], axis=1)
        oo_lp = jnp.concatenate([zrow, p_oo_l], axis=1)

        acc = (p_ee * taps[4]                    # w[1,1] @ (2oy,   2ox)
               + p_eo_l * taps[3]                # w[1,0] @ (2oy,   2ox-1)
               + p_eo * taps[5]                  # w[1,2] @ (2oy,   2ox+1)
               + oe_p[:, 0:hh] * taps[1]         # w[0,1] @ (2oy-1, 2ox)
               + oe_p[:, 1:hh + 1] * taps[7]     # w[2,1] @ (2oy+1, 2ox)
               + oo_lp[:, 0:hh] * taps[0]        # w[0,0] @ (2oy-1, 2ox-1)
               + oo_lp[:, 1:hh + 1] * taps[6]    # w[2,0] @ (2oy+1, 2ox-1)
               + oo_p[:, 0:hh] * taps[2]         # w[0,2] @ (2oy-1, 2ox+1)
               + oo_p[:, 1:hh + 1] * taps[8])    # w[2,2] @ (2oy+1, 2ox+1)

    acc = jnp.clip(acc + b_dw, 0.0, 6.0)

    # 1x1 project conv (BN folded, no ReLU) on the MXU.
    p = jnp.dot(acc.reshape(bt * ho * wo, c_hid).astype(w_proj_ref.dtype),
                w_proj_ref[...], preferred_element_type=jnp.float32)
    p = p + b_proj_ref[...].astype(jnp.float32)
    o_ref[...] = p.reshape(bt, ho, wo, c_out).astype(o_ref.dtype)


def _pick_batch_tile(n, spatial, c_in, c_hid, c_out, budget_bytes=12 * 2 ** 20):
    # rough per-image f32 working set: input + output blocks + ~8 hidden-size temps
    per_image = 4 * spatial * (c_in + c_out + 8 * c_hid)
    bt = int(max(1, min(n, budget_bytes // max(per_image, 1))))
    while n % bt:
        bt -= 1
    return bt


def fused_inverted_residual(x_nhwc, fp, *, stride, expand_ratio, oup):
    """x_nhwc: (N, H, W, Cin). fp: folded + lane-padded params. -> (N, Ho, Wo, oup) f32."""
    n, h, w, c_in = x_nhwc.shape
    c_hid = fp["w_dw"].shape[-1]          # lane-padded hidden
    c_out = fp["w_proj"].shape[-1]        # lane-padded oup
    ho = conv2d_out_dim(h, 3, padding=1, stride=stride)
    wo = conv2d_out_dim(w, 3, padding=1, stride=stride)
    has_expand = expand_ratio != 1

    x_nhwc = x_nhwc.astype(fp["w_dw"].dtype)
    if not has_expand:
        # Depthwise operates directly on x: pad its channels to the lane-padded hidden
        # width (zero channels stay zero through the whole block and are sliced off).
        x_nhwc = jnp.pad(x_nhwc, ((0, 0),) * 3 + ((0, c_hid - c_in),))
        c_in = c_hid

    if stride == 1:
        x_in = x_nhwc
    else:
        assert stride == 2 and h % 2 == 0 and w % 2 == 0, "stride-2 path assumes even H, W"
        # TODO(synk): odd H/W with stride 2 needs an extra boundary phase.
        hh, wh = h // 2, w // 2
        # Phase-split (even/odd rows x cols) in XLA on the small c_in tensor so the
        # in-kernel depthwise only touches output-resolution planes.
        x_in = (x_nhwc.reshape(n, hh, 2, wh, 2, c_in)
                .transpose(0, 2, 4, 1, 3, 5)
                .reshape(n, 4 * hh, wh, c_in))
    n_rows, n_cols = x_in.shape[1], x_in.shape[2]

    bt = _pick_batch_tile(n, h * w, c_in, c_hid, c_out)

    kern = functools.partial(_fused_inverted_residual_kernel,
                             stride=stride, has_expand=has_expand,
                             bt=bt, h=h, w=w, ho=ho, wo=wo)

    in_specs = [pl.BlockSpec((bt, n_rows, n_cols, c_in), lambda b: (b, 0, 0, 0))]
    args = [x_in]
    if has_expand:
        in_specs += [pl.BlockSpec((c_in, c_hid), lambda b: (0, 0)),
                     pl.BlockSpec((1, c_hid), lambda b: (0, 0))]
        args += [fp["w_exp"], fp["b_exp"]]
    in_specs += [pl.BlockSpec((10, c_hid), lambda b: (0, 0)),
                 pl.BlockSpec((c_hid, c_out), lambda b: (0, 0)),
                 pl.BlockSpec((1, c_out), lambda b: (0, 0))]
    args += [fp["w_dw"], fp["w_proj"], fp["b_proj"]]

    out = pl.pallas_call(
        kern,
        out_shape=jax.ShapeDtypeStruct((n, ho, wo, c_out), jnp.float32),
        grid_spec=pltpu.PrefetchScalarGridSpec(
            num_scalar_prefetch=0,
            grid=(n // bt,),
            in_specs=in_specs,
            out_specs=pl.BlockSpec((bt, ho, wo, c_out), lambda b: (b, 0, 0, 0)),
        ),
        compiler_params=pltpu.CompilerParams(
            dimension_semantics=("parallel",),       # safe: kernel is stateless per step
            vmem_limit_bytes=32 * 1024 * 1024),
    )(*args)
    return out[..., :oup]


# ------------------------------- parameters ---------------------------------

def init_params(key, inp, hidden, oup):
    keys = jax.random.split(key, 15)

    def bn_fold(k1, k2, k3, k4, c):
        gamma = 1.0 + 0.1 * jax.random.normal(k1, (c,), jnp.float32)
        beta = 0.1 * jax.random.normal(k2, (c,), jnp.float32)
        mean = 0.05 * jax.random.normal(k3, (c,), jnp.float32)
        var = 1.0 + 0.1 * jnp.abs(jax.random.normal(k4, (c,), jnp.float32))
        scale = gamma / jnp.sqrt(var + 1e-5)
        bias = beta - mean * scale
        return scale, bias

    w_exp = 0.3 * jax.random.normal(keys[0], (inp, hidden), jnp.float32)      # (Cin, Chid)
    w_dw = 0.3 * jax.random.normal(keys[1], (3, 3, hidden), jnp.float32)      # (kh, kw, Chid)
    w_proj = 0.3 * jax.random.normal(keys[2], (hidden, oup), jnp.float32)     # (Chid, Cout)
    s1, b1 = bn_fold(keys[3], keys[4], keys[5], keys[6], hidden)
    s2, b2 = bn_fold(keys[7], keys[8], keys[9], keys[10], hidden)
    s3, b3 = bn_fold(keys[11], keys[12], keys[13], keys[14], oup)
    return dict(w_exp=w_exp, w_dw=w_dw, w_proj=w_proj,
                s1=s1, b1=b1, s2=s2, b2=b2, s3=s3, b3=b3)


def fold_bn_params(params, *, expand_ratio, dtype=jnp.float32):
    """Fold inference BN into conv weights and zero-pad channels to 128 lanes."""
    hidden = params["w_dw"].shape[-1]
    oup = params["w_proj"].shape[-1]
    c_hid = _round_up(hidden, LANE)
    c_out = _round_up(oup, LANE)

    def pad_to(a, target, axis):
        padw = [(0, 0)] * a.ndim
        padw[axis] = (0, target - a.shape[axis])
        return jnp.pad(a, padw)

    w_dw = (params["w_dw"] * params["s2"]).reshape(9, hidden)
    dw_pack = jnp.concatenate([w_dw, params["b2"][None, :]], axis=0)    # (10, hidden)

    folded = dict(
        w_dw=pad_to(dw_pack, c_hid, 1).astype(dtype),
        w_proj=pad_to(pad_to(params["w_proj"] * params["s3"][None, :], c_hid, 0),
                      c_out, 1).astype(dtype),
        b_proj=pad_to(params["b3"][None, :], c_out, 1).astype(jnp.float32),
    )
    if expand_ratio != 1:
        folded["w_exp"] = pad_to(params["w_exp"] * params["s1"][None, :], c_hid, 1).astype(dtype)
        folded["b_exp"] = pad_to(params["b1"][None, :], c_hid, 1).astype(jnp.float32)
    return folded


# ------------------------------- module glue --------------------------------

def inverted_residual_forward(folded, x_nchw, norm_1, norm_2, flops, *,
                              inp, oup, stride, expand_ratio, h, w):
    n = x_nchw.shape[0]
    hidden = int(round(inp * expand_ratio))
    ho = conv2d_out_dim(h, 3, padding=1, stride=stride)
    wo = conv2d_out_dim(w, 3, padding=1, stride=stride)
    spatial = ho * wo

    # TODO(synk): keep the surrounding model in NHWC to drop these two transposes.
    x = jnp.transpose(x_nchw, (0, 2, 3, 1)).astype(jnp.float32)   # NCHW -> NHWC
    y = fused_inverted_residual(x, folded, stride=stride,
                                expand_ratio=expand_ratio, oup=oup)
    x_out = jnp.transpose(y, (0, 3, 1, 2))                        # back to NCHW

    # bookkeeping (matches the PyTorch non-residual branch exactly)
    norm_s = jnp.full((n,), float(spatial), jnp.float32)
    norm_c = jnp.full((n,), float(hidden), jnp.float32)
    norm_s_t = jnp.array([float(spatial)], jnp.float32)
    norm_c_t = jnp.array([float(hidden)], jnp.float32)
    norm_1 = jnp.concatenate([norm_1, jnp.concatenate([norm_s, norm_s_t])[None, :]], axis=0)
    norm_2 = jnp.concatenate([norm_2, jnp.concatenate([norm_c, norm_c_t])[None, :]], axis=0)

    flops_full_val = 9.0 * spatial * hidden + float(spatial * hidden * oup)
    if expand_ratio != 1:
        flops_full_val += float(h * w * hidden * inp)
    flops_full = jnp.array([flops_full_val], jnp.float32)
    flops_mask = jnp.array([0.0], jnp.float32)
    flops_blk = jnp.concatenate([jnp.ones((n,), jnp.float32) * flops_full,
                                 flops_mask, flops_full])
    flops = jnp.concatenate([flops, flops_blk[None, :]], axis=0)
    return x_out, norm_1, norm_2, flops


def _reference(params, x_nchw, *, stride, expand_ratio):
    # pure-JAX reference of the conv path for a correctness check
    x = jnp.transpose(x_nchw, (0, 2, 3, 1))
    hidden = params["w_dw"].shape[-1]
    if expand_ratio != 1:
        y = jnp.einsum("nhwc,cd->nhwd", x, params["w_exp"])
        y = jnp.clip(y * params["s1"] + params["b1"], 0.0, 6.0)
    else:
        y = x
    dw = params["w_dw"].reshape(3, 3, 1, hidden)
    y = lax.conv_general_dilated(y, dw, (stride, stride), ((1, 1), (1, 1)),
                                 dimension_numbers=("NHWC", "HWIO", "NHWC"),
                                 feature_group_count=hidden)
    y = jnp.clip(y * params["s2"] + params["b2"], 0.0, 6.0)
    y = jnp.einsum("nhwc,cd->nhwd", y, params["w_proj"])
    y = y * params["s3"] + params["b3"]
    return jnp.transpose(y, (0, 3, 1, 2))


if __name__ == "__main__":
    key = jax.random.PRNGKey(0)

    # All configs have use_res_connect == False (stride 2, or inp != oup).
    configs = [
        # (N, INP, OUP, STRIDE, EXPAND, H, W)
        (2, 4, 8, 2, 6, 16, 16),    # expand + stride-2 (phase-split path)
        (2, 4, 8, 1, 6, 16, 16),    # expand + stride-1
        (2, 4, 8, 1, 1, 16, 16),    # no-expand + stride-1
    ]
    for idx, (N, INP, OUP, STRIDE, EXPAND, H, W) in enumerate(configs):
        HIDDEN = int(round(INP * EXPAND))
        HO = conv2d_out_dim(H, 3, padding=1, stride=STRIDE)
        WO = conv2d_out_dim(W, 3, padding=1, stride=STRIDE)

        key, kx, kp = jax.random.split(key, 3)
        x = jax.random.normal(kx, (N, INP, H, W), jnp.float32)
        params = init_params(kp, INP, HIDDEN, OUP)
        folded = fold_bn_params(params, expand_ratio=EXPAND)

        norm_1 = jnp.zeros((1, N + 1), jnp.float32)
        norm_2 = jnp.zeros((1, N + 1), jnp.float32)
        flops = jnp.zeros((1, N + 2), jnp.float32)

        out = inverted_residual_forward(folded, x, norm_1, norm_2, flops,
                                        inp=INP, oup=OUP, stride=STRIDE,
                                        expand_ratio=EXPAND, h=H, w=W)
        out = jax.block_until_ready(out)
        x_out, n1, n2, fl = out

        assert x_out.shape == (N, OUP, HO, WO)
        assert n1.shape == (2, N + 1) and n2.shape == (2, N + 1) and fl.shape == (2, N + 2)

        ref = _reference(params, x, stride=STRIDE, expand_ratio=EXPAND)
        assert bool(jnp.allclose(x_out, ref, atol=2e-2, rtol=2e-2)), f"mismatch in config {idx}"

    print("KERNEL_OK")
</pallas_src>

<mosaic_0001>
module attributes {stable_mosaic.version = 11 : i64} {
  func.func @_fused_inverted_residual_kernel(%arg0: i32, %arg1: memref<2x32x8x4xf32, #tpu.memory_space<vmem>>, %arg2: memref<4x128xf32, #tpu.memory_space<vmem>>, %arg3: memref<1x128xf32, #tpu.memory_space<vmem>>, %arg4: memref<10x128xf32, #tpu.memory_space<vmem>>, %arg5: memref<128x128xf32, #tpu.memory_space<vmem>>, %arg6: memref<1x128xf32, #tpu.memory_space<vmem>>, %arg7: memref<2x8x8x128xf32, #tpu.memory_space<vmem>>) attributes {dimension_semantics = [#tpu.dimension_semantics<parallel>], iteration_bounds = array<i64: 1>, scalar_prefetch = 0 : i64, scratch_operands = 0 : i64, tpu.core_type = #tpu.core_type<tc>, window_params = [{transform_indices = @transform_0, window_bounds = array<i64: 2, 32, 8, 4>}, {pipeline_mode = #tpu.pipeline_mode<synchronous>, transform_indices = @transform_1, window_bounds = array<i64: 4, 128>}, {pipeline_mode = #tpu.pipeline_mode<synchronous>, transform_indices = @transform_2, window_bounds = array<i64: 1, 128>}, {pipeline_mode = #tpu.pipeline_mode<synchronous>, transform_indices = @transform_3, window_bounds = array<i64: 10, 128>}, {pipeline_mode = #tpu.pipeline_mode<synchronous>, transform_indices = @transform_4, window_bounds = array<i64: 128, 128>}, {pipeline_mode = #tpu.pipeline_mode<synchronous>, transform_indices = @transform_5, window_bounds = array<i64: 1, 128>}, {transform_indices = @transform_6, window_bounds = array<i64: 2, 8, 8, 128>}]} {
    %c0 = arith.constant 0 : index
    %c0_0 = arith.constant 0 : index
    %0 = vector.load %arg4[%c0, %c0_0] : memref<10x128xf32, #tpu.memory_space<vmem>>, vector<10x128xf32>
    %1 = vector.extract_strided_slice %0 {offsets = [0, 0], sizes = [1, 128], strides = [1, 1]} : vector<10x128xf32> to vector<1x128xf32>
    %2 = vector.shape_cast %1 : vector<1x128xf32> to vector<128xf32>
    %3 = vector.extract_strided_slice %0 {offsets = [1, 0], sizes = [1, 128], strides = [1, 1]} : vector<10x128xf32> to vector<1x128xf32>
    %4 = vector.shape_cast %3 : vector<1x128xf32> to vector<128xf32>
    %5 = vector.extract_strided_slice %0 {offsets = [2, 0], sizes = [1, 128], strides = [1, 1]} : vector<10x128xf32> to vector<1x128xf32>
    %6 = vector.shape_cast %5 : vector<1x128xf32> to vector<128xf32>
    %7 = vector.extract_strided_slice %0 {offsets = [3, 0], sizes = [1, 128], strides = [1, 1]} : vector<10x128xf32> to vector<1x128xf32>
    %8 = vector.shape_cast %7 : vector<1x128xf32> to vector<128xf32>
    %9 = vector.extract_strided_slice %0 {offsets = [4, 0], sizes = [1, 128], strides = [1, 1]} : vector<10x128xf32> to vector<1x128xf32>
    %10 = vector.shape_cast %9 : vector<1x128xf32> to vector<128xf32>
    %11 = vector.extract_strided_slice %0 {offsets = [5, 0], sizes = [1, 128], strides = [1, 1]} : vector<10x128xf32> to vector<1x128xf32>
    %12 = vector.shape_cast %11 : vector<1x128xf32> to vector<128xf32>
    %13 = vector.extract_strided_slice %0 {offsets = [6, 0], sizes = [1, 128], strides = [1, 1]} : vector<10x128xf32> to vector<1x128xf32>
    %14 = vector.shape_cast %13 : vector<1x128xf32> to vector<128xf32>
    %15 = vector.extract_strided_slice %0 {offsets = [7, 0], sizes = [1, 128], strides = [1, 1]} : vector<10x128xf32> to vector<1x128xf32>
    %16 = vector.shape_cast %15 : vector<1x128xf32> to vector<128xf32>
    %17 = vector.extract_strided_slice %0 {offsets = [8, 0], sizes = [1, 128], strides = [1, 1]} : vector<10x128xf32> to vector<1x128xf32>
    %18 = vector.shape_cast %17 : vector<1x128xf32> to vector<128xf32>
    %19 = vector.extract_strided_slice %0 {offsets = [9, 0], sizes = [1, 128], strides = [1, 1]} : vector<10x128xf32> to vector<1x128xf32>
    %20 = vector.shape_cast %19 : vector<1x128xf32> to vector<128xf32>
    %c0_1 = arith.constant 0 : index
    %c0_2 = arith.constant 0 : index
    %c0_3 = arith.constant 0 : index
    %c0_4 = arith.constant 0 : index
    %21 = vector.load %arg1[%c0_1, %c0_2, %c0_3, %c0_4] : memref<2x32x8x4xf32, #tpu.memory_space<vmem>>, vector<2x32x8x4xf32>
    %22 = vector.shape_cast %21 : vector<2x32x8x4xf32> to vector<512x4xf32>
    %c0_5 = arith.constant 0 : index
    %c0_6 = arith.constant 0 : index
    %23 = vector.load %arg2[%c0_5, %c0_6] : memref<4x128xf32, #tpu.memory_space<vmem>>, vector<4x128xf32>
    %cst = arith.constant dense<0.000000e+00> : vector<512x128xf32>
    %24 = tpu.matmul %22, %23, %cst {dimension_numbers = #tpu.dot_dimension_numbers<[1], [0], [0], [1], [0, 0, 1, 1], [], []>} : vector<512x4xf32>, vector<4x128xf32>, vector<512x128xf32> -> vector<512x128xf32>
    %c0_7 = arith.constant 0 : index
    %c0_8 = arith.constant 0 : index
    %25 = vector.load %arg3[%c0_7, %c0_8] : memref<1x128xf32, #tpu.memory_space<vmem>>, vector<1x128xf32>
    %26 = vector.broadcast %25 : vector<1x128xf32> to vector<512x128xf32>
    %27 = arith.addf %24, %26 : vector<512x128xf32>
    %cst_9 = arith.constant 0.000000e+00 : f32
    %cst_10 = arith.constant 6.000000e+00 : f32
    %28 = vector.broadcast %cst_9 : f32 to vector<512x128xf32>
    %29 = arith.maximumf %28, %27 : vector<512x128xf32>
    %30 = vector.broadcast %cst_10 : f32 to vector<512x128xf32>
    %31 = arith.minimumf %30, %29 : vector<512x128xf32>
    %32 = vector.shape_cast %31 : vector<512x128xf32> to vector<2x32x8x128xf32>
    %33 = vector.extract_strided_slice %32 {offsets = [0, 0, 0, 0], sizes = [2, 8, 8, 128], strides = [1, 1, 1, 1]} : vector<2x32x8x128xf32> to vector<2x8x8x128xf32>
    %34 = vector.extract_strided_slice %32 {offsets = [0, 8, 0, 0], sizes = [2, 8, 8, 128], strides = [1, 1, 1, 1]} : vector<2x32x8x128xf32> to vector<2x8x8x128xf32>
    %35 = vector.extract_strided_slice %32 {offsets = [0, 16, 0, 0], sizes = [2, 8, 8, 128], strides = [1, 1, 1, 1]} : vector<2x32x8x128xf32> to vector<2x8x8x128xf32>
    %36 = vector.extract_strided_slice %32 {offsets = [0, 24, 0, 0], sizes = [2, 8, 8, 128], strides = [1, 1, 1, 1]} : vector<2x32x8x128xf32> to vector<2x8x8x128xf32>
    %37 = tpu.iota {dimensions = array<i32: 0>} : vector<8x128xi32>
    %c0_i32 = arith.constant 0 : i32
    %38 = vector.broadcast %c0_i32 : i32 to vector<8x128xi32>
    %39 = arith.cmpi ne, %37, %38 : vector<8x128xi32>
    %40 = arith.extui %39 : vector<8x128xi1> to vector<8x128xi32>
    %41 = arith.sitofp %40 : vector<8x128xi32> to vector<8x128xf32>
    %c1_i32 = arith.constant 1 : i32
    %42 = tpu.dynamic_rotate %34 by %c1_i32 dim 2 : vector<2x8x8x128xf32>, i32 -> vector<2x8x8x128xf32>
    %43 = vector.shape_cast %41 : vector<8x128xf32> to vector<1x1x8x128xf32>
    %44 = vector.broadcast %43 : vector<1x1x8x128xf32> to vector<2x8x8x128xf32>
    %45 = arith.mulf %42, %44 : vector<2x8x8x128xf32>
    %c1_i32_11 = arith.constant 1 : i32
    %46 = tpu.dynamic_rotate %36 by %c1_i32_11 dim 2 : vector<2x8x8x128xf32>, i32 -> vector<2x8x8x128xf32>
    %47 = vector.shape_cast %41 : vector<8x128xf32> to vector<1x1x8x128xf32>
    %48 = vector.broadcast %47 : vector<1x1x8x128xf32> to vector<2x8x8x128xf32>
    %49 = arith.mulf %46, %48 : vector<2x8x8x128xf32>
    %cst_12 = arith.constant 0.000000e+00 : f32
    %50 = vector.broadcast %cst_12 : f32 to vector<2x1x8x128xf32>
    %51 = tpu.concatenate %50, %35 in 1 : vector<2x1x8x128xf32>, vector<2x8x8x128xf32> -> vector<2x9x8x128xf32>
    %52 = tpu.concatenate %50, %36 in 1 : vector<2x1x8x128xf32>, vector<2x8x8x128xf32> -> vector<2x9x8x128xf32>
    %53 = tpu.concatenate %50, %49 in 1 : vector<2x1x8x128xf32>, vector<2x8x8x128xf32> -> vector<2x9x8x128xf32>
    %54 = vector.shape_cast %10 : vector<128xf32> to vector<1x1x1x128xf32>
    %55 = vector.broadcast %54 : vector<1x1x1x128xf32> to vector<2x8x8x128xf32>
    %56 = arith.mulf %33, %55 : vector<2x8x8x128xf32>
    %57 = vector.shape_cast %8 : vector<128xf32> to vector<1x1x1x128xf32>
    %58 = vector.broadcast %57 : vector<1x1x1x128xf32> to vector<2x8x8x128xf32>
    %59 = arith.mulf %45, %58 : vector<2x8x8x128xf32>
    %60 = arith.addf %56, %59 : vector<2x8x8x128xf32>
    %61 = vector.shape_cast %12 : vector<128xf32> to vector<1x1x1x128xf32>
    %62 = vector.broadcast %61 : vector<1x1x1x128xf32> to vector<2x8x8x128xf32>
    %63 = arith.mulf %34, %62 : vector<2x8x8x128xf32>
    %64 = arith.addf %60, %63 : vector<2x8x8x128xf32>
    %65 = vector.extract_strided_slice %51 {offsets = [0, 0, 0, 0], sizes = [2, 8, 8, 128], strides = [1, 1, 1, 1]} : vector<2x9x8x128xf32> to vector<2x8x8x128xf32>
    %66 = vector.shape_cast %4 : vector<128xf32> to vector<1x1x1x128xf32>
    %67 = vector.broadcast %66 : vector<1x1x1x128xf32> to vector<2x8x8x128xf32>
    %68 = arith.mulf %65, %67 : vector<2x8x8x128xf32>
    %69 = arith.addf %64, %68 : vector<2x8x8x128xf32>
    %70 = vector.extract_strided_slice %51 {offsets = [0, 1, 0, 0], sizes = [2, 8, 8, 128], strides = [1, 1, 1, 1]} : vector<2x9x8x128xf32> to vector<2x8x8x128xf32>
    %71 = vector.shape_cast %16 : vector<128xf32> to vector<1x1x1x128xf32>
    %72 = vector.broadcast %71 : vector<1x1x1x128xf32> to vector<2x8x8x128xf32>
    %73 = arith.mulf %70, %72 : vector<2x8x8x128xf32>
    %74 = arith.addf %69, %73 : vector<2x8x8x128xf32>
    %75 = vector.extract_strided_slice %53 {offsets = [0, 0, 0, 0], sizes = [2, 8, 8, 128], strides = [1, 1, 1, 1]} : vector<2x9x8x128xf32> to vector<2x8x8x128xf32>
    %76 = vector.shape_cast %2 : vector<128xf32> to vector<1x1x1x128xf32>
    %77 = vector.broadcast %76 : vector<1x1x1x128xf32> to vector<2x8x8x128xf32>
    %78 = arith.mulf %75, %77 : vector<2x8x8x128xf32>
    %79 = arith.addf %74, %78 : vector<2x8x8x128xf32>
    %80 = vector.extract_strided_slice %53 {offsets = [0, 1, 0, 0], sizes = [2, 8, 8, 128], strides = [1, 1, 1, 1]} : vector<2x9x8x128xf32> to vector<2x8x8x128xf32>
    %81 = vector.shape_cast %14 : vector<128xf32> to vector<1x1x1x128xf32>
    %82 = vector.broadcast %81 : vector<1x1x1x128xf32> to vector<2x8x8x128xf32>
    %83 = arith.mulf %80, %82 : vector<2x8x8x128xf32>
    %84 = arith.addf %79, %83 : vector<2x8x8x128xf32>
    %85 = vector.extract_strided_slice %52 {offsets = [0, 0, 0, 0], sizes = [2, 8, 8, 128], strides = [1, 1, 1, 1]} : vector<2x9x8x128xf32> to vector<2x8x8x128xf32>
    %86 = vector.shape_cast %6 : vector<128xf32> to vector<1x1x1x128xf32>
    %87 = vector.broadcast %86 : vector<1x1x1x128xf32> to vector<2x8x8x128xf32>
    %88 = arith.mulf %85, %87 : vector<2x8x8x128xf32>
    %89 = arith.addf %84, %88 : vector<2x8x8x128xf32>
    %90 = vector.extract_strided_slice %52 {offsets = [0, 1, 0, 0], sizes = [2, 8, 8, 128], strides = [1, 1, 1, 1]} : vector<2x9x8x128xf32> to vector<2x8x8x128xf32>
    %91 = vector.shape_cast %18 : vector<128xf32> to vector<1x1x1x128xf32>
    %92 = vector.broadcast %91 : vector<1x1x1x128xf32> to vector<2x8x8x128xf32>
    %93 = arith.mulf %90, %92 : vector<2x8x8x128xf32>
    %94 = arith.addf %89, %93 : vector<2x8x8x128xf32>
    %95 = vector.shape_cast %20 : vector<128xf32> to vector<1x1x1x128xf32>
    %96 = vector.broadcast %95 : vector<1x1x1x128xf32> to vector<2x8x8x128xf32>
    %97 = arith.addf %94, %96 : vector<2x8x8x128xf32>
    %cst_13 = arith.constant 0.000000e+00 : f32
    %cst_14 = arith.constant 6.000000e+00 : f32
    %98 = vector.broadcast %cst_13 : f32 to vector<2x8x8x128xf32>
    %99 = arith.maximumf %98, %97 : vector<2x8x8x128xf32>
    %100 = vector.broadcast %cst_14 : f32 to vector<2x8x8x128xf32>
    %101 = arith.minimumf %100, %99 : vector<2x8x8x128xf32>
    %102 = vector.shape_cast %101 : vector<2x8x8x128xf32> to vector<128x128xf32>
    %c0_15 = arith.constant 0 : index
    %c0_16 = arith.constant 0 : index
    %103 = vector.load %arg5[%c0_15, %c0_16] : memref<128x128xf32, #tpu.memory_space<vmem>>, vector<128x128xf32>
    %cst_17 = arith.constant dense<0.000000e+00> : vector<128x128xf32>
    %104 = tpu.matmul %102, %103, %cst_17 {dimension_numbers = #tpu.dot_dimension_numbers<[1], [0], [0], [1], [0, 0, 1, 1], [], []>} : vector<128x128xf32>, vector<128x128xf32>, vector<128x128xf32> -> vector<128x128xf32>
    %c0_18 = arith.constant 0 : index
    %c0_19 = arith.constant 0 : index
    %105 = vector.load %arg6[%c0_18, %c0_19] : memref<1x128xf32, #tpu.memory_space<vmem>>, vector<1x128xf32>
    %106 = vector.broadcast %105 : vector<1x128xf32> to vector<128x128xf32>
    %107 = arith.addf %104, %106 : vector<128x128xf32>
    %108 = vector.shape_cast %107 : vector<128x128xf32> to vector<2x8x8x128xf32>
    %c0_20 = arith.constant 0 : index
    %c0_21 = arith.constant 0 : index
    %c0_22 = arith.constant 0 : index
    %c0_23 = arith.constant 0 : index
    %109 = vector.load %arg7[%c0_20, %c0_21, %c0_22, %c0_23] : memref<2x8x8x128xf32, #tpu.memory_space<vmem>>, vector<2x8x8x128xf32>
    tpu.vector_store %arg7[%c0_20, %c0_21, %c0_22, %c0_23], %108 {strides = array<i32>} : memref<2x8x8x128xf32, #tpu.memory_space<vmem>>, vector<2x8x8x128xf32>,
    return
  }
  func.func @transform_0(%arg0: i32) -> (i32, i32, i32, i32) {
    %c0_i32 = arith.constant 0 : i32
    %c0_i32_0 = arith.constant 0 : i32
    %c0_i32_1 = arith.constant 0 : i32
    %c0_i32_2 = arith.constant 0 : i32
    return %arg0, %c0_i32, %c0_i32_0, %c0_i32_1 : i32, i32, i32, i32
  }
  func.func @transform_1(%arg0: i32) -> (i32, i32) {
    %c0_i32 = arith.constant 0 : i32
    %c0_i32_0 = arith.constant 0 : i32
    %c0_i32_1 = arith.constant 0 : i32
    return %c0_i32, %c0_i32_0 : i32, i32
  }
  func.func @transform_2(%arg0: i32) -> (i32, i32) {
    %c0_i32 = arith.constant 0 : i32
    %c0_i32_0 = arith.constant 0 : i32
    %c0_i32_1 = arith.constant 0 : i32
    return %c0_i32, %c0_i32_0 : i32, i32
  }
  func.func @transform_3(%arg0: i32) -> (i32, i32) {
    %c0_i32 = arith.constant 0 : i32
    %c0_i32_0 = arith.constant 0 : i32
    %c0_i32_1 = arith.constant 0 : i32
    return %c0_i32, %c0_i32_0 : i32, i32
  }
  func.func @transform_4(%arg0: i32) -> (i32, i32) {
    %c0_i32 = arith.constant 0 : i32
    %c0_i32_0 = arith.constant 0 : i32
    %c0_i32_1 = arith.constant 0 : i32
    return %c0_i32, %c0_i32_0 : i32, i32
  }
  func.func @transform_5(%arg0: i32) -> (i32, i32) {
    %c0_i32 = arith.constant 0 : i32
    %c0_i32_0 = arith.constant 0 : i32
    %c0_i32_1 = arith.constant 0 : i32
    return %c0_i32, %c0_i32_0 : i32, i32
  }
  func.func @transform_6(%arg0: i32) -> (i32, i32, i32, i32) {
    %c0_i32 = arith.constant 0 : i32
    %c0_i32_0 = arith.constant 0 : i32
    %c0_i32_1 = arith.constant 0 : i32
    %c0_i32_2 = arith.constant 0 : i32
    return %arg0, %c0_i32, %c0_i32_0, %c0_i32_1 : i32, i32, i32, i32
  }
}

</mosaic_0001>

<llo_original>
// kernel: tpu_custom_call.1
$region0: #{tpu_custom_call.1}
  #allocation0 [shape = 'u32[]', space=smem, size = 0x4, offset = 0x4, fixed_abs, tag = 'smem constant byte address 0x4 - core index']
  #allocation1 [shape = 'u32[144,128]{1,0:T(1,128)}', space=vmem, size = 0x12000, scoped, tag = 'internal scratch']
  %s0 = inlined_call_operand.vmem [shape: f32[2,32,8,4], index: 0, kind: input, shape index: {}]
  %s1 = inlined_call_operand.vmem [shape: f32[4,128], index: 1, kind: input, shape index: {}]
  %s2 = inlined_call_operand.vmem [shape: f32[1,128], index: 2, kind: input, shape index: {}]
  %s3 = inlined_call_operand.vmem [shape: f32[10,128], index: 3, kind: input, shape index: {}]
  %s4 = inlined_call_operand.vmem [shape: f32[128,128], index: 4, kind: input, shape index: {}]
  %s5 = inlined_call_operand.vmem [shape: f32[1,128], index: 5, kind: input, shape index: {}]
  %s6 = inlined_call_operand.hbm [shape: f32[2,8,8,128], index: 6, kind: output, shape index: {}]
  %s7 = sld [smem:[#allocation0]]
  $region34: #{tpu_custom_call.1} parent=0
    _
  %s9 = ssub.s32 1, %s7
  %s10 = scalar_select 0, %s9, %s7
  $region1: #{tpu_custom_call.1} parent=0
    #allocation2 [shape = 'u8[65536]{0}', space=vmem, size = 0x10000, scoped, tag = 'output window, operand 0, single buffered']
    #allocation3 [shape = 's32[1]{0}', space=sflag, size = 0x4, scoped, tag = 'scoped memory for tpu_custom_call.1']
    %11 = vsyncpa [#allocation3], 0
    // Predicated region
    $region2: #{tpu_custom_call.1} parent=1 // pred_check
      _
    $region3: #{tpu_custom_call.1} parent=1 // pred_check_branch
      %13 = sbr.rel (0) target = $region5
    $region4: #{tpu_custom_call.1} parent=1 // pred_region
      _
    $region5: #{tpu_custom_call.1} parent=1 // pred_fallthru
      _
    // Predicated region
    $region6: #{tpu_custom_call.1} parent=1 // pred_check
      _
    $region7: #{tpu_custom_call.1} parent=1 // pred_check_branch
      %15 = sbr.rel (0) target = $region9
    $region8: #{tpu_custom_call.1} parent=1 // pred_region
      _
    $region9: #{tpu_custom_call.1} parent=1 // pred_fallthru
      _
    // Predicated region
    $region10: #{tpu_custom_call.1} parent=1 // pred_check
      _
    $region11: #{tpu_custom_call.1} parent=1 // pred_check_branch
      %17 = sbr.rel (0) target = $region13
    $region12: #{tpu_custom_call.1} parent=1 // pred_region
      _
    $region13: #{tpu_custom_call.1} parent=1 // pred_fallthru
      _
    // Predicated region
    $region14: #{tpu_custom_call.1} parent=1 // pred_check
      _
    $region15: #{tpu_custom_call.1} parent=1 // pred_check_branch
      %19 = sbr.rel (0) target = $region17
    $region16: #{tpu_custom_call.1} parent=1 // pred_region
      _
    $region17: #{tpu_custom_call.1} parent=1 // pred_fallthru
      _
    // Predicated region
    $region18: #{tpu_custom_call.1} parent=1 // pred_check
      _
    $region19: #{tpu_custom_call.1} parent=1 // pred_check_branch
      %21 = sbr.rel (0) target = $region21
    $region20: #{tpu_custom_call.1} parent=1 // pred_region
      _
    $region21: #{tpu_custom_call.1} parent=1 // pred_fallthru
      _
    // Predicated region
    $region22: #{tpu_custom_call.1} parent=1 // pred_check
      _
    $region23: #{tpu_custom_call.1} parent=1 // pred_check_branch
      %23 = sbr.rel (0) target = $region25
    $region24: #{tpu_custom_call.1} parent=1 // pred_region
      _
    $region25: #{tpu_custom_call.1} parent=1 // pred_fallthru
      _
    %v24 = vld [vmem:[%s3] sm:$0xff]
    %v25 = vld [vmem:[%s3 + $0x8] sm:$0x3]
    %v26 = vld [vmem:[%s0] sm:$0xff]
    %v27 = vld [vmem:[%s0 + $0x8] sm:$0xff]
    %v28 = vld [vmem:[%s0 + $0x10] sm:$0xff]
    %v29 = vld [vmem:[%s0 + $0x18] sm:$0xff]
    %v30 = vld [vmem:[%s0 + $0x20] sm:$0xff]
    %v31 = vld [vmem:[%s0 + $0x28] sm:$0xff]
    %v32 = vld [vmem:[%s0 + $0x30] sm:$0xff]
    %v33 = vld [vmem:[%s0 + $0x38] sm:$0xff]
    %v34 = vld [vmem:[%s0 + $0x40] sm:$0xff]
    %v35 = vld [vmem:[%s0 + $0x48] sm:$0xff]
    %v36 = vld [vmem:[%s0 + $0x50] sm:$0xff]
    %v37 = vld [vmem:[%s0 + $0x58] sm:$0xff]
    %v38 = vld [vmem:[%s0 + $0x60] sm:$0xff]
    %v39 = vld [vmem:[%s0 + $0x68] sm:$0xff]
    %v40 = vld [vmem:[%s0 + $0x70] sm:$0xff]
    %v41 = vld [vmem:[%s0 + $0x78] sm:$0xff]
    %v42 = vld [vmem:[%s0 + $0x80] sm:$0xff]
    %v43 = vld [vmem:[%s0 + $0x88] sm:$0xff]
    %v44 = vld [vmem:[%s0 + $0x90] sm:$0xff]
    %v45 = vld [vmem:[%s0 + $0x98] sm:$0xff]
    %v46 = vld [vmem:[%s0 + $0xa0] sm:$0xff]
    %v47 = vld [vmem:[%s0 + $0xa8] sm:$0xff]
    %v48 = vld [vmem:[%s0 + $0xb0] sm:$0xff]
    %v49 = vld [vmem:[%s0 + $0xb8] sm:$0xff]
    %v50 = vld [vmem:[%s0 + $0xc0] sm:$0xff]
    %v51 = vld [vmem:[%s0 + $0xc8] sm:$0xff]
    %v52 = vld [vmem:[%s0 + $0xd0] sm:$0xff]
    %v53 = vld [vmem:[%s0 + $0xd8] sm:$0xff]
    %v54 = vld [vmem:[%s0 + $0xe0] sm:$0xff]
    %v55 = vld [vmem:[%s0 + $0xe8] sm:$0xff]
    %v56 = vld [vmem:[%s0 + $0xf0] sm:$0xff]
    %v57 = vld [vmem:[%s0 + $0xf8] sm:$0xff]
    %v58 = vld [vmem:[%s0 + $0x100] sm:$0xff]
    %v59 = vld [vmem:[%s0 + $0x108] sm:$0xff]
    %v60 = vld [vmem:[%s0 + $0x110] sm:$0xff]
    %v61 = vld [vmem:[%s0 + $0x118] sm:$0xff]
    %v62 = vld [vmem:[%s0 + $0x120] sm:$0xff]
    %v63 = vld [vmem:[%s0 + $0x128] sm:$0xff]
    %v64 = vld [vmem:[%s0 + $0x130] sm:$0xff]
    %v65 = vld [vmem:[%s0 + $0x138] sm:$0xff]
    %v66 = vld [vmem:[%s0 + $0x140] sm:$0xff]
    %v67 = vld [vmem:[%s0 + $0x148] sm:$0xff]
    %v68 = vld [vmem:[%s0 + $0x150] sm:$0xff]
    %v69 = vld [vmem:[%s0 + $0x158] sm:$0xff]
    %v70 = vld [vmem:[%s0 + $0x160] sm:$0xff]
    %v71 = vld [vmem:[%s0 + $0x168] sm:$0xff]
    %v72 = vld [vmem:[%s0 + $0x170] sm:$0xff]
    %v73 = vld [vmem:[%s0 + $0x178] sm:$0xff]
    %v74 = vld [vmem:[%s0 + $0x180] sm:$0xff]
    %v75 = vld [vmem:[%s0 + $0x188] sm:$0xff]
    %v76 = vld [vmem:[%s0 + $0x190] sm:$0xff]
    %v77 = vld [vmem:[%s0 + $0x198] sm:$0xff]
    %v78 = vld [vmem:[%s0 + $0x1a0] sm:$0xff]
    %v79 = vld [vmem:[%s0 + $0x1a8] sm:$0xff]
    %v80 = vld [vmem:[%s0 + $0x1b0] sm:$0xff]
    %v81 = vld [vmem:[%s0 + $0x1b8] sm:$0xff]
    %v82 = vld [vmem:[%s0 + $0x1c0] sm:$0xff]
    %v83 = vld [vmem:[%s0 + $0x1c8] sm:$0xff]
    %v84 = vld [vmem:[%s0 + $0x1d0] sm:$0xff]
    %v85 = vld [vmem:[%s0 + $0x1d8] sm:$0xff]
    %v86 = vld [vmem:[%s0 + $0x1e0] sm:$0xff]
    %v87 = vld [vmem:[%s0 + $0x1e8] sm:$0xff]
    %v88 = vld [vmem:[%s0 + $0x1f0] sm:$0xff]
    %v89 = vld [vmem:[%s0 + $0x1f8] sm:$0xff]
    %v90 = vld [vmem:[%s1] sm:$0xf]
    %v91 = vld [vmem:[%s2] sm:$0x1]
    %v93 = vlaneseq
    %v94 = vshrl.u32 %v93, 7
    %v95 = vsub.s32 0, %v94
    %v96 = vrot.slane %v91, %v95
    %vm98 = vcmask 31744
    %v100 = vsel %vm98, %v26, 0
    %v103 = vsel %vm98, %v27, 0
    %v106 = vsel %vm98, %v28, 0
    %v109 = vsel %vm98, %v29, 0
    %v112 = vsel %vm98, %v30, 0
    %v115 = vsel %vm98, %v31, 0
    %v118 = vsel %vm98, %v32, 0
    %v121 = vsel %vm98, %v33, 0
    %v124 = vsel %vm98, %v34, 0
    %v127 = vsel %vm98, %v35, 0
    %v130 = vsel %vm98, %v36, 0
    %v133 = vsel %vm98, %v37, 0
    %v136 = vsel %vm98, %v38, 0
    %v139 = vsel %vm98, %v39, 0
    %v142 = vsel %vm98, %v40, 0
    %v145 = vsel %vm98, %v41, 0
    %v148 = vsel %vm98, %v42, 0
    %v151 = vsel %vm98, %v43, 0
    %v154 = vsel %vm98, %v44, 0
    %v157 = vsel %vm98, %v45, 0
    %v160 = vsel %vm98, %v46, 0
    %v163 = vsel %vm98, %v47, 0
    %v166 = vsel %vm98, %v48, 0
    %v169 = vsel %vm98, %v49, 0
    %v172 = vsel %vm98, %v50, 0
    %v175 = vsel %vm98, %v51, 0
    %v178 = vsel %vm98, %v52, 0
    %v181 = vsel %vm98, %v53, 0
    %v184 = vsel %vm98, %v54, 0
    %v187 = vsel %vm98, %v55, 0
    %v190 = vsel %vm98, %v56, 0
    %v193 = vsel %vm98, %v57, 0
    %v196 = vsel %vm98, %v58, 0
    %v199 = vsel %vm98, %v59, 0
    %v202 = vsel %vm98, %v60, 0
    %v205 = vsel %vm98, %v61, 0
    %v208 = vsel %vm98, %v62, 0
    %v211 = vsel %vm98, %v63, 0
    %v214 = vsel %vm98, %v64, 0
    %v217 = vsel %vm98, %v65, 0
    %v220 = vsel %vm98, %v66, 0
    %v223 = vsel %vm98, %v67, 0
    %v226 = vsel %vm98, %v68, 0
    %v229 = vsel %vm98, %v69, 0
    %v232 = vsel %vm98, %v70, 0
    %v235 = vsel %vm98, %v71, 0
    %v238 = vsel %vm98, %v72, 0
    %v241 = vsel %vm98, %v73, 0
    %v244 = vsel %vm98, %v74, 0
    %v247 = vsel %vm98, %v75, 0
    %v250 = vsel %vm98, %v76, 0
    %v253 = vsel %vm98, %v77, 0
    %v256 = vsel %vm98, %v78, 0
    %v259 = vsel %vm98, %v79, 0
    %v262 = vsel %vm98, %v80, 0
    %v265 = vsel %vm98, %v81, 0
    %v268 = vsel %vm98, %v82, 0
    %v271 = vsel %vm98, %v83, 0
    %v274 = vsel %vm98, %v84, 0
    %v277 = vsel %vm98, %v85, 0
    %v280 = vsel %vm98, %v86, 0
    %v283 = vsel %vm98, %v87, 0
    %v286 = vsel %vm98, %v88, 0
    %v289 = vsel %vm98, %v89, 0
    %vm291 = vcmask 1043456
    %v293 = vsel %vm291, %v90, 0
    %295 = vmatprep.subr.mxu0 0.0
    %296 = vmatpush1.msra.mxu0 %v293
    %297 = vmatprep.subr.mxu0 0.0
    %298 = vmatpush1.msra.mxu0 0.0
    %299 = vmatprep.subr.mxu0 0.0
    %300 = vmatpush1.msra.mxu0 0.0
    %301 = vmatprep.subr.mxu0 0.0
    %302 = vmatpush1.msra.mxu0 0.0
    %303 = vmatprep.subr.mxu0 0.0
    %304 = vmatpush1.msra.mxu0 0.0
    %305 = vmatprep.subr.mxu0 0.0
    %306 = vmatpush1.msra.mxu0 0.0
    %307 = vmatprep.subr.mxu0 0.0
    %308 = vmatpush1.msra.mxu0 0.0
    %309 = vmatprep.subr.mxu0 0.0
    %310 = vmatpush1.msra.mxu0 0.0
    %311 = vmatprep.subr.mxu0 0.0
    %312 = vmatpush1.msra.mxu0 0.0
    %313 = vmatprep.subr.mxu0 0.0
    %314 = vmatpush1.msra.mxu0 0.0
    %315 = vmatprep.subr.mxu0 0.0
    %316 = vmatpush1.msra.mxu0 0.0
    %317 = vmatprep.subr.mxu0 0.0
    %318 = vmatpush1.msra.mxu0 0.0
    %319 = vmatprep.subr.mxu0 0.0
    %320 = vmatpush1.msra.mxu0 0.0
    %321 = vmatprep.subr.mxu0 0.0
    %322 = vmatpush1.msra.mxu0 0.0
    %323 = vmatprep.subr.mxu0 0.0
    %324 = vmatpush1.msra.mxu0 0.0
    %325 = vmatprep.subr.mxu0 0.0
    %326 = vmatpush1.msra.mxu0 0.0
    %327 = vmatprep.subr.mxu0 0.0
    %328 = vmatpush1.msra.mxu0 0.0
    %329 = vmatprep.subr.mxu0 0.0
    %330 = vmatpush1.msra.mxu0 0.0
    %331 = vmatprep.subr.mxu0 0.0
    %332 = vmatpush1.msra.mxu0 0.0
    %333 = vmatprep.subr.mxu0 0.0
    %334 = vmatpush1.msra.mxu0 0.0
    %335 = vmatprep.subr.mxu0 0.0
    %336 = vmatpush1.msra.mxu0 0.0
    %337 = vmatprep.subr.mxu0 0.0
    %338 = vmatpush1.msra.mxu0 0.0
    %339 = vmatprep.subr.mxu0 0.0
    %340 = vmatpush1.msra.mxu0 0.0
    %341 = vmatprep.subr.mxu0 0.0
    %342 = vmatpush1.msra.mxu0 0.0
    %343 = vmatprep.subr.mxu0 0.0
    %344 = vmatpush1.msra.mxu0 0.0
    %345 = vmatprep.subr.mxu0 0.0
    %346 = vmatpush1.msra.mxu0 0.0
    %347 = vmatprep.subr.mxu0 0.0
    %348 = vmatpush1.msra.mxu0 0.0
    %349 = vmatprep.subr.mxu0 0.0
    %350 = vmatpush1.msra.mxu0 0.0
    %351 = vmatprep.subr.mxu0 0.0
    %352 = vmatpush1.msra.mxu0 0.0
    %353 = vmatprep.subr.mxu0 0.0
    %354 = vmatpush1.msra.mxu0 0.0
    %355 = vmatprep.subr.mxu0 0.0
    %356 = vmatpush1.msra.mxu0 0.0
    %357 = vmatprep.subr.mxu0 0.0
    %358 = vmatpush1.msra.mxu0 0.0
    %359 = vmatprep.mubr.f32.mxu0 0.0
    %360 = vmatmul.mubr.f32.gmra.mrb[0].mxu0 %v100
    %v361 = vpop.f32.mrb[0].mxu0
    %v362 = vadd.f32 %v96, %v361
    %v363 = vpop.f32.mrb[0].mxu0
    %364 = vmatprep.mubr.f32.mxu0 0.0
    %365 = vmatmul.mubr.f32.gmra.mrb[0].mxu0 %v103
    %v366 = vpop.f32.mrb[0].mxu0
    %v367 = vadd.f32 %v96, %v366
    %v368 = vpop.f32.mrb[0].mxu0
    %369 = vmatprep.mubr.f32.mxu0 0.0
    %370 = vmatmul.mubr.f32.gmra.mrb[0].mxu0 %v106
    %v371 = vpop.f32.mrb[0].mxu0
    %v372 = vadd.f32 %v96, %v371
    %v373 = vpop.f32.mrb[0].mxu0
    %374 = vmatprep.mubr.f32.mxu0 0.0
    %375 = vmatmul.mubr.f32.gmra.mrb[0].mxu0 %v109
    %v376 = vpop.f32.mrb[0].mxu0
    %v377 = vadd.f32 %v96, %v376
    %v378 = vpop.f32.mrb[0].mxu0
    %379 = vmatprep.mubr.f32.mxu0 0.0
    %380 = vmatmul.mubr.f32.gmra.mrb[0].mxu0 %v112
    %v381 = vpop.f32.mrb[0].mxu0
    %v382 = vadd.f32 %v96, %v381
    %v383 = vpop.f32.mrb[0].mxu0
    %384 = vmatprep.mubr.f32.mxu0 0.0
    %385 = vmatmul.mubr.f32.gmra.mrb[0].mxu0 %v115
    %v386 = vpop.f32.mrb[0].mxu0
    %v387 = vadd.f32 %v96, %v386
    %v388 = vpop.f32.mrb[0].mxu0
    %389 = vmatprep.mubr.f32.mxu0 0.0
    %390 = vmatmul.mubr.f32.gmra.mrb[0].mxu0 %v118
    %v391 = vpop.f32.mrb[0].mxu0
    %v392 = vadd.f32 %v96, %v391
    %v393 = vpop.f32.mrb[0].mxu0
    %394 = vmatprep.mubr.f32.mxu0 0.0
    %395 = vmatmul.mubr.f32.gmra.mrb[0].mxu0 %v121
    %v396 = vpop.f32.mrb[0].mxu0
    %v397 = vadd.f32 %v96, %v396
    %v398 = vpop.f32.mrb[0].mxu0
    %399 = vmatprep.mubr.f32.mxu0 0.0
    %400 = vmatmul.mubr.f32.gmra.mrb[0].mxu0 %v124
    %v401 = vpop.f32.mrb[0].mxu0
    %v402 = vadd.f32 %v96, %v401
    %v403 = vpop.f32.mrb[0].mxu0
    %404 = vmatprep.mubr.f32.mxu0 0.0
    %405 = vmatmul.mubr.f32.gmra.mrb[0].mxu0 %v127
    %v406 = vpop.f32.mrb[0].mxu0
    %v407 = vadd.f32 %v96, %v406
    %v408 = vpop.f32.mrb[0].mxu0
    %409 = vmatprep.mubr.f32.mxu0 0.0
    %410 = vmatmul.mubr.f32.gmra.mrb[0].mxu0 %v130
    %v411 = vpop.f32.mrb[0].mxu0
    %v412 = vadd.f32 %v96, %v411
    %v413 = vpop.f32.mrb[0].mxu0
    %414 = vmatprep.mubr.f32.mxu0 0.0
    %415 = vmatmul.mubr.f32.gmra.mrb[0].mxu0 %v133
    %v416 = vpop.f32.mrb[0].mxu0
    %v417 = vadd.f32 %v96, %v416
    %v418 = vpop.f32.mrb[0].mxu0
    %419 = vmatprep.mubr.f32.mxu0 0.0
    %420 = vmatmul.mubr.f32.gmra.mrb[0].mxu0 %v136
    %v421 = vpop.f32.mrb[0].mxu0
    %v422 = vadd.f32 %v96, %v421
    %v423 = vpop.f32.mrb[0].mxu0
    %424 = vmatprep.mubr.f32.mxu0 0.0
    %425 = vmatmul.mubr.f32.gmra.mrb[0].mxu0 %v139
    %v426 = vpop.f32.mrb[0].mxu0
    %v427 = vadd.f32 %v96, %v426
    %v428 = vpop.f32.mrb[0].mxu0
    %429 = vmatprep.mubr.f32.mxu0 0.0
    %430 = vmatmul.mubr.f32.gmra.mrb[0].mxu0 %v142
    %v431 = vpop.f32.mrb[0].mxu0
    %v432 = vadd.f32 %v96, %v431
    %v433 = vpop.f32.mrb[0].mxu0
    %434 = vmatprep.mubr.f32.mxu0 0.0
    %435 = vmatmul.mubr.f32.gmra.mrb[0].mxu0 %v145
    %v436 = vpop.f32.mrb[0].mxu0
    %v437 = vadd.f32 %v96, %v436
    %v438 = vpop.f32.mrb[0].mxu0
    %439 = vmatprep.mubr.f32.mxu0 0.0
    %440 = vmatmul.mubr.f32.gmra.mrb[0].mxu0 %v148
    %v441 = vpop.f32.mrb[0].mxu0
    %v442 = vadd.f32 %v96, %v441
    %v443 = vpop.f32.mrb[0].mxu0
    %444 = vmatprep.mubr.f32.mxu0 0.0
    %445 = vmatmul.mubr.f32.gmra.mrb[0].mxu0 %v151
    %v446 = vpop.f32.mrb[0].mxu0
    %v447 = vadd.f32 %v96, %v446
    %v448 = vpop.f32.mrb[0].mxu0
    %449 = vmatprep.mubr.f32.mxu0 0.0
    %450 = vmatmul.mubr.f32.gmra.mrb[0].mxu0 %v154
    %v451 = vpop.f32.mrb[0].mxu0
    %v452 = vadd.f32 %v96, %v451
    %v453 = vpop.f32.mrb[0].mxu0
    %454 = vmatprep.mubr.f32.mxu0 0.0
    %455 = vmatmul.mubr.f32.gmra.mrb[0].mxu0 %v157
    %v456 = vpop.f32.mrb[0].mxu0
    %v457 = vadd.f32 %v96, %v456
    %v458 = vpop.f32.mrb[0].mxu0
    %459 = vmatprep.mubr.f32.mxu0 0.0
    %460 = vmatmul.mubr.f32.gmra.mrb[0].mxu0 %v160
    %v461 = vpop.f32.mrb[0].mxu0
    %v462 = vadd.f32 %v96, %v461
    %v463 = vpop.f32.mrb[0].mxu0
    %464 = vmatprep.mubr.f32.mxu0 0.0
    %465 = vmatmul.mubr.f32.gmra.mrb[0].mxu0 %v163
    %v466 = vpop.f32.mrb[0].mxu0
    %v467 = vadd.f32 %v96, %v466
    %v468 = vpop.f32.mrb[0].mxu0
    %469 = vmatprep.mubr.f32.mxu0 0.0
    %470 = vmatmul.mubr.f32.gmra.mrb[0].mxu0 %v166
    %v471 = vpop.f32.mrb[0].mxu0
    %v472 = vadd.f32 %v96, %v471
    %v473 = vpop.f32.mrb[0].mxu0
    %474 = vmatprep.mubr.f32.mxu0 0.0
    %475 = vmatmul.mubr.f32.gmra.mrb[0].mxu0 %v169
    %v476 = vpop.f32.mrb[0].mxu0
    %v477 = vadd.f32 %v96, %v476
    %v478 = vpop.f32.mrb[0].mxu0
    %479 = vmatprep.mubr.f32.mxu0 0.0
    %480 = vmatmul.mubr.f32.gmra.mrb[0].mxu0 %v172
    %v481 = vpop.f32.mrb[0].mxu0
    %v482 = vadd.f32 %v96, %v481
    %v483 = vpop.f32.mrb[0].mxu0
    %484 = vmatprep.mubr.f32.mxu0 0.0
    %485 = vmatmul.mubr.f32.gmra.mrb[0].mxu0 %v175
    %v486 = vpop.f32.mrb[0].mxu0
    %v487 = vadd.f32 %v96, %v486
    %v488 = vpop.f32.mrb[0].mxu0
    %489 = vmatprep.mubr.f32.mxu0 0.0
    %490 = vmatmul.mubr.f32.gmra.mrb[0].mxu0 %v178
    %v491 = vpop.f32.mrb[0].mxu0
    %v492 = vadd.f32 %v96, %v491
    %v493 = vpop.f32.mrb[0].mxu0
    %494 = vmatprep.mubr.f32.mxu0 0.0
    %495 = vmatmul.mubr.f32.gmra.mrb[0].mxu0 %v181
    %v496 = vpop.f32.mrb[0].mxu0
    %v497 = vadd.f32 %v96, %v496
    %v498 = vpop.f32.mrb[0].mxu0
    %499 = vmatprep.mubr.f32.mxu0 0.0
    %500 = vmatmul.mubr.f32.gmra.mrb[0].mxu0 %v184
    %v501 = vpop.f32.mrb[0].mxu0
    %v502 = vadd.f32 %v96, %v501
    %v503 = vpop.f32.mrb[0].mxu0
    %504 = vmatprep.mubr.f32.mxu0 0.0
    %505 = vmatmul.mubr.f32.gmra.mrb[0].mxu0 %v187
    %v506 = vpop.f32.mrb[0].mxu0
    %v507 = vadd.f32 %v96, %v506
    %v508 = vpop.f32.mrb[0].mxu0
    %509 = vmatprep.mubr.f32.mxu0 0.0
    %510 = vmatmul.mubr.f32.gmra.mrb[0].mxu0 %v190
    %v511 = vpop.f32.mrb[0].mxu0
    %v512 = vadd.f32 %v96, %v511
    %v513 = vpop.f32.mrb[0].mxu0
    %514 = vmatprep.mubr.f32.mxu0 0.0
    %515 = vmatmul.mubr.f32.gmra.mrb[0].mxu0 %v193
    %v516 = vpop.f32.mrb[0].mxu0
    %v517 = vadd.f32 %v96, %v516
    %v518 = vpop.f32.mrb[0].mxu0
    %519 = vmatprep.mubr.f32.mxu0 0.0
    %520 = vmatmul.mubr.f32.gmra.mrb[0].mxu0 %v196
    %v521 = vpop.f32.mrb[0].mxu0
    %v522 = vadd.f32 %v96, %v521
    %v523 = vpop.f32.mrb[0].mxu0
    %524 = vmatprep.mubr.f32.mxu0 0.0
    %525 = vmatmul.mubr.f32.gmra.mrb[0].mxu0 %v199
    %v526 = vpop.f32.mrb[0].mxu0
    %v527 = vadd.f32 %v96, %v526
    %v528 = vpop.f32.mrb[0].mxu0
    %529 = vmatprep.mubr.f32.mxu0 0.0
    %530 = vmatmul.mubr.f32.gmra.mrb[0].mxu0 %v202
    %v531 = vpop.f32.mrb[0].mxu0
    %v532 = vadd.f32 %v96, %v531
    %v533 = vpop.f32.mrb[0].mxu0
    %534 = vmatprep.mubr.f32.mxu0 0.0
    %535 = vmatmul.mubr.f32.gmra.mrb[0].mxu0 %v205
    %v536 = vpop.f32.mrb[0].mxu0
    %v537 = vadd.f32 %v96, %v536
    %v538 = vpop.f32.mrb[0].mxu0
    %539 = vmatprep.mubr.f32.mxu0 0.0
    %540 = vmatmul.mubr.f32.gmra.mrb[0].mxu0 %v208
    %v541 = vpop.f32.mrb[0].mxu0
    %v542 = vadd.f32 %v96, %v541
    %v543 = vpop.f32.mrb[0].mxu0
    %544 = vmatprep.mubr.f32.mxu0 0.0
    %545 = vmatmul.mubr.f32.gmra.mrb[0].mxu0 %v211
    %v546 = vpop.f32.mrb[0].mxu0
    %v547 = vadd.f32 %v96, %v546
    %v548 = vpop.f32.mrb[0].mxu0
    %549 = vmatprep.mubr.f32.mxu0 0.0
    %550 = vmatmul.mubr.f32.gmra.mrb[0].mxu0 %v214
    %v551 = vpop.f32.mrb[0].mxu0
    %v552 = vadd.f32 %v96, %v551
    %v553 = vpop.f32.mrb[0].mxu0
    %554 = vmatprep.mubr.f32.mxu0 0.0
    %555 = vmatmul.mubr.f32.gmra.mrb[0].mxu0 %v217
    %v556 = vpop.f32.mrb[0].mxu0
    %v557 = vadd.f32 %v96, %v556
    %v558 = vpop.f32.mrb[0].mxu0
    %559 = vmatprep.mubr.f32.mxu0 0.0
    %560 = vmatmul.mubr.f32.gmra.mrb[0].mxu0 %v220
    %v561 = vpop.f32.mrb[0].mxu0
    %v562 = vadd.f32 %v96, %v561
    %v563 = vpop.f32.mrb[0].mxu0
    %564 = vmatprep.mubr.f32.mxu0 0.0
    %565 = vmatmul.mubr.f32.gmra.mrb[0].mxu0 %v223
    %v566 = vpop.f32.mrb[0].mxu0
    %v567 = vadd.f32 %v96, %v566
    %v568 = vpop.f32.mrb[0].mxu0
    %569 = vmatprep.mubr.f32.mxu0 0.0
    %570 = vmatmul.mubr.f32.gmra.mrb[0].mxu0 %v226
    %v571 = vpop.f32.mrb[0].mxu0
    %v572 = vadd.f32 %v96, %v571
    %v573 = vpop.f32.mrb[0].mxu0
    %574 = vmatprep.mubr.f32.mxu0 0.0
    %575 = vmatmul.mubr.f32.gmra.mrb[0].mxu0 %v229
    %v576 = vpop.f32.mrb[0].mxu0
    %v577 = vadd.f32 %v96, %v576
    %v578 = vpop.f32.mrb[0].mxu0
    %579 = vmatprep.mubr.f32.mxu0 0.0
    %580 = vmatmul.mubr.f32.gmra.mrb[0].mxu0 %v232
    %v581 = vpop.f32.mrb[0].mxu0
    %v582 = vadd.f32 %v96, %v581
    %v583 = vpop.f32.mrb[0].mxu0
    %584 = vmatprep.mubr.f32.mxu0 0.0
    %585 = vmatmul.mubr.f32.gmra.mrb[0].mxu0 %v235
    %v586 = vpop.f32.mrb[0].mxu0
    %v587 = vadd.f32 %v96, %v586
    %v588 = vpop.f32.mrb[0].mxu0
    %589 = vmatprep.mubr.f32.mxu0 0.0
    %590 = vmatmul.mubr.f32.gmra.mrb[0].mxu0 %v238
    %v591 = vpop.f32.mrb[0].mxu0
    %v592 = vadd.f32 %v96, %v591
    %v593 = vpop.f32.mrb[0].mxu0
    %594 = vmatprep.mubr.f32.mxu0 0.0
    %595 = vmatmul.mubr.f32.gmra.mrb[0].mxu0 %v241
    %v596 = vpop.f32.mrb[0].mxu0
    %v597 = vadd.f32 %v96, %v596
    %v598 = vpop.f32.mrb[0].mxu0
    %599 = vmatprep.mubr.f32.mxu0 0.0
    %600 = vmatmul.mubr.f32.gmra.mrb[0].mxu0 %v244
    %v601 = vpop.f32.mrb[0].mxu0
    %v602 = vadd.f32 %v96, %v601
    %v603 = vpop.f32.mrb[0].mxu0
    %604 = vmatprep.mubr.f32.mxu0 0.0
    %605 = vmatmul.mubr.f32.gmra.mrb[0].mxu0 %v247
    %v606 = vpop.f32.mrb[0].mxu0
    %v607 = vadd.f32 %v96, %v606
    %v608 = vpop.f32.mrb[0].mxu0
    %609 = vmatprep.mubr.f32.mxu0 0.0
    %610 = vmatmul.mubr.f32.gmra.mrb[0].mxu0 %v250
    %v611 = vpop.f32.mrb[0].mxu0
    %v612 = vadd.f32 %v96, %v611
    %v613 = vpop.f32.mrb[0].mxu0
    %614 = vmatprep.mubr.f32.mxu0 0.0
    %615 = vmatmul.mubr.f32.gmra.mrb[0].mxu0 %v253
    %v616 = vpop.f32.mrb[0].mxu0
    %v617 = vadd.f32 %v96, %v616
    %v618 = vpop.f32.mrb[0].mxu0
    %619 = vmatprep.mubr.f32.mxu0 0.0
    %620 = vmatmul.mubr.f32.gmra.mrb[0].mxu0 %v256
    %v621 = vpop.f32.mrb[0].mxu0
    %v622 = vadd.f32 %v96, %v621
    %v623 = vpop.f32.mrb[0].mxu0
    %624 = vmatprep.mubr.f32.mxu0 0.0
    %625 = vmatmul.mubr.f32.gmra.mrb[0].mxu0 %v259
    %v626 = vpop.f32.mrb[0].mxu0
    %v627 = vadd.f32 %v96, %v626
    %v628 = vpop.f32.mrb[0].mxu0
    %629 = vmatprep.mubr.f32.mxu0 0.0
    %630 = vmatmul.mubr.f32.gmra.mrb[0].mxu0 %v262
    %v631 = vpop.f32.mrb[0].mxu0
    %v632 = vadd.f32 %v96, %v631
    %v633 = vpop.f32.mrb[0].mxu0
    %634 = vmatprep.mubr.f32.mxu0 0.0
    %635 = vmatmul.mubr.f32.gmra.mrb[0].mxu0 %v265
    %v636 = vpop.f32.mrb[0].mxu0
    %v637 = vadd.f32 %v96, %v636
    %v638 = vpop.f32.mrb[0].mxu0
    %639 = vmatprep.mubr.f32.mxu0 0.0
    %640 = vmatmul.mubr.f32.gmra.mrb[0].mxu0 %v268
    %v641 = vpop.f32.mrb[0].mxu0
    %v642 = vadd.f32 %v96, %v641
    %v643 = vpop.f32.mrb[0].mxu0
    %644 = vmatprep.mubr.f32.mxu0 0.0
    %645 = vmatmul.mubr.f32.gmra.mrb[0].mxu0 %v271
    %v646 = vpop.f32.mrb[0].mxu0
    %v647 = vadd.f32 %v96, %v646
    %v648 = vpop.f32.mrb[0].mxu0
    %649 = vmatprep.mubr.f32.mxu0 0.0
    %650 = vmatmul.mubr.f32.gmra.mrb[0].mxu0 %v274
    %v651 = vpop.f32.mrb[0].mxu0
    %v652 = vadd.f32 %v96, %v651
    %v653 = vpop.f32.mrb[0].mxu0
    %654 = vmatprep.mubr.f32.mxu0 0.0
    %655 = vmatmul.mubr.f32.gmra.mrb[0].mxu0 %v277
    %v656 = vpop.f32.mrb[0].mxu0
    %v657 = vadd.f32 %v96, %v656
    %v658 = vpop.f32.mrb[0].mxu0
    %659 = vmatprep.mubr.f32.mxu0 0.0
    %660 = vmatmul.mubr.f32.gmra.mrb[0].mxu0 %v280
    %v661 = vpop.f32.mrb[0].mxu0
    %v662 = vadd.f32 %v96, %v661
    %v663 = vpop.f32.mrb[0].mxu0
    %664 = vmatprep.mubr.f32.mxu0 0.0
    %665 = vmatmul.mubr.f32.gmra.mrb[0].mxu0 %v283
    %v666 = vpop.f32.mrb[0].mxu0
    %v667 = vadd.f32 %v96, %v666
    %v668 = vpop.f32.mrb[0].mxu0
    %669 = vmatprep.mubr.f32.mxu0 0.0
    %670 = vmatmul.mubr.f32.gmra.mrb[0].mxu0 %v286
    %v671 = vpop.f32.mrb[0].mxu0
    %v672 = vadd.f32 %v96, %v671
    %v673 = vpop.f32.mrb[0].mxu0
    %674 = vmatprep.mubr.f32.mxu0 0.0
    %675 = vmatmul.mubr.f32.gmra.mrb[0].mxu0 %v289
    %v676 = vpop.f32.mrb[0].mxu0
    %v677 = vadd.f32 %v96, %v676
    %v678 = vpop.f32.mrb[0].mxu0
    %679 = vdwg.mxu0
    %v680 = vmax.f32 %v362, 0.0
    %v681 = vmax.f32 %v367, 0.0
    %v682 = vmax.f32 %v372, 0.0
    %v683 = vmax.f32 %v377, 0.0
    %v684 = vmax.f32 %v382, 0.0
    %v685 = vmax.f32 %v387, 0.0
    %v686 = vmax.f32 %v392, 0.0
    %v687 = vmax.f32 %v397, 0.0
    %v688 = vmax.f32 %v402, 0.0
    %v689 = vmax.f32 %v407, 0.0
    %v690 = vmax.f32 %v412, 0.0
    %v691 = vmax.f32 %v417, 0.0
    %v692 = vmax.f32 %v422, 0.0
    %v693 = vmax.f32 %v427, 0.0
    %v694 = vmax.f32 %v432, 0.0
    %v695 = vmax.f32 %v437, 0.0
    %v696 = vmax.f32 %v442, 0.0
    %v697 = vmax.f32 %v447, 0.0
    %v698 = vmax.f32 %v452, 0.0
    %v699 = vmax.f32 %v457, 0.0
    %v700 = vmax.f32 %v462, 0.0
    %v701 = vmax.f32 %v467, 0.0
    %v702 = vmax.f32 %v472, 0.0
    %v703 = vmax.f32 %v477, 0.0
    %v704 = vmax.f32 %v482, 0.0
    %v705 = vmax.f32 %v487, 0.0
    %v706 = vmax.f32 %v492, 0.0
    %v707 = vmax.f32 %v497, 0.0
    %v708 = vmax.f32 %v502, 0.0
    %v709 = vmax.f32 %v507, 0.0
    %v710 = vmax.f32 %v512, 0.0
    %v711 = vmax.f32 %v517, 0.0
    %v712 = vmax.f32 %v522, 0.0
    %v713 = vmax.f32 %v527, 0.0
    %v714 = vmax.f32 %v532, 0.0
    %v715 = vmax.f32 %v537, 0.0
    %v716 = vmax.f32 %v542, 0.0
    %v717 = vmax.f32 %v547, 0.0
    %v718 = vmax.f32 %v552, 0.0
    %v719 = vmax.f32 %v557, 0.0
    %v720 = vmax.f32 %v562, 0.0
    %v721 = vmax.f32 %v567, 0.0
    %v722 = vmax.f32 %v572, 0.0
    %v723 = vmax.f32 %v577, 0.0
    %v724 = vmax.f32 %v582, 0.0
    %v725 = vmax.f32 %v587, 0.0
    %v726 = vmax.f32 %v592, 0.0
    %v727 = vmax.f32 %v597, 0.0
    %v728 = vmax.f32 %v602, 0.0
    %v729 = vmax.f32 %v607, 0.0
    %v730 = vmax.f32 %v612, 0.0
    %v731 = vmax.f32 %v617, 0.0
    %v732 = vmax.f32 %v622, 0.0
    %v733 = vmax.f32 %v627, 0.0
    %v734 = vmax.f32 %v632, 0.0
    %v735 = vmax.f32 %v637, 0.0
    %v736 = vmax.f32 %v642, 0.0
    %v737 = vmax.f32 %v647, 0.0
    %v738 = vmax.f32 %v652, 0.0
    %v739 = vmax.f32 %v657, 0.0
    %v740 = vmax.f32 %v662, 0.0
    %v741 = vmax.f32 %v667, 0.0
    %v742 = vmax.f32 %v672, 0.0
    %v743 = vmax.f32 %v677, 0.0
    %v744 = vmin.f32 %v680, 6.0
    %v745 = vmin.f32 %v681, 6.0
    %v746 = vmin.f32 %v682, 6.0
    %v747 = vmin.f32 %v683, 6.0
    %v748 = vmin.f32 %v684, 6.0
    %v749 = vmin.f32 %v685, 6.0
    %v750 = vmin.f32 %v686, 6.0
    %v751 = vmin.f32 %v687, 6.0
    %v752 = vmin.f32 %v688, 6.0
    %v753 = vmin.f32 %v689, 6.0
    %v754 = vmin.f32 %v690, 6.0
    %v755 = vmin.f32 %v691, 6.0
    %v756 = vmin.f32 %v692, 6.0
    %v757 = vmin.f32 %v693, 6.0
    %v758 = vmin.f32 %v694, 6.0
    %v759 = vmin.f32 %v695, 6.0
    %v760 = vmin.f32 %v696, 6.0
    %v761 = vmin.f32 %v697, 6.0
    %v762 = vmin.f32 %v698, 6.0
    %v763 = vmin.f32 %v699, 6.0
    %v764 = vmin.f32 %v700, 6.0
    %v765 = vmin.f32 %v701, 6.0
    %v766 = vmin.f32 %v702, 6.0
    %v767 = vmin.f32 %v703, 6.0
    %v768 = vmin.f32 %v704, 6.0
    %v769 = vmin.f32 %v705, 6.0
    %v770 = vmin.f32 %v706, 6.0
    %v771 = vmin.f32 %v707, 6.0
    %v772 = vmin.f32 %v708, 6.0
    %v773 = vmin.f32 %v709, 6.0
    %v774 = vmin.f32 %v710, 6.0
    %v775 = vmin.f32 %v711, 6.0
    %v776 = vmin.f32 %v712, 6.0
    %v777 = vmin.f32 %v713, 6.0
    %v778 = vmin.f32 %v714, 6.0
    %v779 = vmin.f32 %v715, 6.0
    %v780 = vmin.f32 %v716, 6.0
    %v781 = vmin.f32 %v717, 6.0
    %v782 = vmin.f32 %v718, 6.0
    %v783 = vmin.f32 %v719, 6.0
    %v784 = vmin.f32 %v720, 6.0
    %v785 = vmin.f32 %v721, 6.0
    %v786 = vmin.f32 %v722, 6.0
    %v787 = vmin.f32 %v723, 6.0
    %v788 = vmin.f32 %v724, 6.0
    %v789 = vmin.f32 %v725, 6.0
    %v790 = vmin.f32 %v726, 6.0
    %v791 = vmin.f32 %v727, 6.0
    %v792 = vmin.f32 %v728, 6.0
    %v793 = vmin.f32 %v729, 6.0
    %v794 = vmin.f32 %v730, 6.0
    %v795 = vmin.f32 %v731, 6.0
    %v796 = vmin.f32 %v732, 6.0
    %v797 = vmin.f32 %v733, 6.0
    %v798 = vmin.f32 %v734, 6.0
    %v799 = vmin.f32 %v735, 6.0
    %v800 = vmin.f32 %v736, 6.0
    %v801 = vmin.f32 %v737, 6.0
    %v802 = vmin.f32 %v738, 6.0
    %v803 = vmin.f32 %v739, 6.0
    %v804 = vmin.f32 %v740, 6.0
    %v805 = vmin.f32 %v741, 6.0
    %v806 = vmin.f32 %v742, 6.0
    %v807 = vmin.f32 %v743, 6.0
    %v808 = vlaneseq
    %v809 = vshrl.u32 %v808, 7
    %vm810 = vcmp.ne.s32.totalorder %v809, 0
    %v811 = vsel %vm810, 1, 0
    %v812 = vcvt.s32.f32 %v811
    %v813 = vrot.slane %v752, 7
    %v814 = vrot.slane %v753, 7
    %v815 = vrot.slane %v754, 7
    %v816 = vrot.slane %v755, 7
    %v817 = vrot.slane %v756, 7
    %v818 = vrot.slane %v757, 7
    %v819 = vrot.slane %v758, 7
    %v820 = vrot.slane %v759, 7
    %v821 = vrot.slane %v784, 7
    %v822 = vrot.slane %v785, 7
    %v823 = vrot.slane %v786, 7
    %v824 = vrot.slane %v787, 7
    %v825 = vrot.slane %v788, 7
    %v826 = vrot.slane %v789, 7
    %v827 = vrot.slane %v790, 7
    %v828 = vrot.slane %v791, 7
    %v829 = vmul.f32 %v813, %v812
    %v830 = vmul.f32 %v814, %v812
    %v831 = vmul.f32 %v815, %v812
    %v832 = vmul.f32 %v816, %v812
    %v833 = vmul.f32 %v817, %v812
    %v834 = vmul.f32 %v818, %v812
    %v835 = vmul.f32 %v819, %v812
    %v836 = vmul.f32 %v820, %v812
    %v837 = vmul.f32 %v821, %v812
    %v838 = vmul.f32 %v822, %v812
    %v839 = vmul.f32 %v823, %v812
    %v840 = vmul.f32 %v824, %v812
    %v841 = vmul.f32 %v825, %v812
    %v842 = vmul.f32 %v826, %v812
    %v843 = vmul.f32 %v827, %v812
    %v844 = vmul.f32 %v828, %v812
    %v845 = vrot.slane %v768, 7
    %v846 = vrot.slane %v769, 7
    %v847 = vrot.slane %v770, 7
    %v848 = vrot.slane %v771, 7
    %v849 = vrot.slane %v772, 7
    %v850 = vrot.slane %v773, 7
    %v851 = vrot.slane %v774, 7
    %v852 = vrot.slane %v775, 7
    %v853 = vrot.slane %v800, 7
    %v854 = vrot.slane %v801, 7
    %v855 = vrot.slane %v802, 7
    %v856 = vrot.slane %v803, 7
    %v857 = vrot.slane %v804, 7
    %v858 = vrot.slane %v805, 7
    %v859 = vrot.slane %v806, 7
    %v860 = vrot.slane %v807, 7
    %v861 = vmul.f32 %v845, %v812
    %v862 = vmul.f32 %v846, %v812
    %v863 = vmul.f32 %v847, %v812
    %v864 = vmul.f32 %v848, %v812
    %v865 = vmul.f32 %v849, %v812
    %v866 = vmul.f32 %v850, %v812
    %v867 = vmul.f32 %v851, %v812
    %v868 = vmul.f32 %v852, %v812
    %v869 = vmul.f32 %v853, %v812
    %v870 = vmul.f32 %v854, %v812
    %v871 = vmul.f32 %v855, %v812
    %v872 = vmul.f32 %v856, %v812
    %v873 = vmul.f32 %v857, %v812
    %v874 = vmul.f32 %v858, %v812
    %v875 = vmul.f32 %v859, %v812
    %v876 = vmul.f32 %v860, %v812
    %v877 = vlaneseq
    %v878 = vshrl.u32 %v877, 7
    %v879 = vsub.s32 4, %v878
    %v880 = vrot.slane %v24, %v879
    %v881 = vmul.f32 %v744, %v880
    %v882 = vmul.f32 %v745, %v880
    %v883 = vmul.f32 %v746, %v880
    %v884 = vmul.f32 %v747, %v880
    %v885 = vmul.f32 %v748, %v880
    %v886 = vmul.f32 %v749, %v880
    %v887 = vmul.f32 %v750, %v880
    %v888 = vmul.f32 %v751, %v880
    %v889 = vmul.f32 %v776, %v880
    %v890 = vmul.f32 %v777, %v880
    %v891 = vmul.f32 %v778, %v880
    %v892 = vmul.f32 %v779, %v880
    %v893 = vmul.f32 %v780, %v880
    %v894 = vmul.f32 %v781, %v880
    %v895 = vmul.f32 %v782, %v880
    %v896 = vmul.f32 %v783, %v880
    %v897 = vlaneseq
    %v898 = vshrl.u32 %v897, 7
    %v899 = vsub.s32 3, %v898
    %v900 = vrot.slane %v24, %v899
    %v901 = vmul.f32 %v829, %v900
    %v902 = vmul.f32 %v830, %v900
    %v903 = vmul.f32 %v831, %v900
    %v904 = vmul.f32 %v832, %v900
    %v905 = vmul.f32 %v833, %v900
    %v906 = vmul.f32 %v834, %v900
    %v907 = vmul.f32 %v835, %v900
    %v908 = vmul.f32 %v836, %v900
    %v909 = vmul.f32 %v837, %v900
    %v910 = vmul.f32 %v838, %v900
    %v911 = vmul.f32 %v839, %v900
    %v912 = vmul.f32 %v840, %v900
    %v913 = vmul.f32 %v841, %v900
    %v914 = vmul.f32 %v842, %v900
    %v915 = vmul.f32 %v843, %v900
    %v916 = vmul.f32 %v844, %v900
    %v917 = vadd.f32 %v881, %v901
    %v918 = vadd.f32 %v882, %v902
    %v919 = vadd.f32 %v883, %v903
    %v920 = vadd.f32 %v884, %v904
    %v921 = vadd.f32 %v885, %v905
    %v922 = vadd.f32 %v886, %v906
    %v923 = vadd.f32 %v887, %v907
    %v924 = vadd.f32 %v888, %v908
    %v925 = vadd.f32 %v889, %v909
    %v926 = vadd.f32 %v890, %v910
    %v927 = vadd.f32 %v891, %v911
    %v928 = vadd.f32 %v892, %v912
    %v929 = vadd.f32 %v893, %v913
    %v930 = vadd.f32 %v894, %v914
    %v931 = vadd.f32 %v895, %v915
    %v932 = vadd.f32 %v896, %v916
    %v933 = vlaneseq
    %v934 = vshrl.u32 %v933, 7
    %v935 = vsub.s32 5, %v934
    %v936 = vrot.slane %v24, %v935
    %v937 = vmul.f32 %v752, %v936
    %v938 = vmul.f32 %v753, %v936
    %v939 = vmul.f32 %v754, %v936
    %v940 = vmul.f32 %v755, %v936
    %v941 = vmul.f32 %v756, %v936
    %v942 = vmul.f32 %v757, %v936
    %v943 = vmul.f32 %v758, %v936
    %v944 = vmul.f32 %v759, %v936
    %v945 = vmul.f32 %v784, %v936
    %v946 = vmul.f32 %v785, %v936
    %v947 = vmul.f32 %v786, %v936
    %v948 = vmul.f32 %v787, %v936
    %v949 = vmul.f32 %v788, %v936
    %v950 = vmul.f32 %v789, %v936
    %v951 = vmul.f32 %v790, %v936
    %v952 = vmul.f32 %v791, %v936
    %v953 = vadd.f32 %v917, %v937
    %v954 = vadd.f32 %v918, %v938
    %v955 = vadd.f32 %v919, %v939
    %v956 = vadd.f32 %v920, %v940
    %v957 = vadd.f32 %v921, %v941
    %v958 = vadd.f32 %v922, %v942
    %v959 = vadd.f32 %v923, %v943
    %v960 = vadd.f32 %v924, %v944
    %v961 = vadd.f32 %v925, %v945
    %v962 = vadd.f32 %v926, %v946
    %v963 = vadd.f32 %v927, %v947
    %v964 = vadd.f32 %v928, %v948
    %v965 = vadd.f32 %v929, %v949
    %v966 = vadd.f32 %v930, %v950
    %v967 = vadd.f32 %v931, %v951
    %v968 = vadd.f32 %v932, %v952
    %v969 = vlaneseq
    %v970 = vshrl.u32 %v969, 7
    %v971 = vsub.s32 1, %v970
    %v972 = vrot.slane %v24, %v971
    %v973 = vmul.f32 %v972, 0.0
    %v974 = vmul.f32 %v760, %v972
    %v975 = vmul.f32 %v761, %v972
    %v976 = vmul.f32 %v762, %v972
    %v977 = vmul.f32 %v763, %v972
    %v978 = vmul.f32 %v764, %v972
    %v979 = vmul.f32 %v765, %v972
    %v980 = vmul.f32 %v766, %v972
    %v981 = vmul.f32 %v792, %v972
    %v982 = vmul.f32 %v793, %v972
    %v983 = vmul.f32 %v794, %v972
    %v984 = vmul.f32 %v795, %v972
    %v985 = vmul.f32 %v796, %v972
    %v986 = vmul.f32 %v797, %v972
    %v987 = vmul.f32 %v798, %v972
    %v988 = vadd.f32 %v953, %v973
    %v989 = vadd.f32 %v954, %v974
    %v990 = vadd.f32 %v955, %v975
    %v991 = vadd.f32 %v956, %v976
    %v992 = vadd.f32 %v957, %v977
    %v993 = vadd.f32 %v958, %v978
    %v994 = vadd.f32 %v959, %v979
    %v995 = vadd.f32 %v960, %v980
    %v996 = vadd.f32 %v961, %v973
    %v997 = vadd.f32 %v962, %v981
    %v998 = vadd.f32 %v963, %v982
    %v999 = vadd.f32 %v964, %v983
    %v1000 = vadd.f32 %v965, %v984
    %v1001 = vadd.f32 %v966, %v985
    %v1002 = vadd.f32 %v967, %v986
    %v1003 = vadd.f32 %v968, %v987
    %v1004 = vlaneseq
    %v1005 = vshrl.u32 %v1004, 7
    %v1006 = vsub.s32 7, %v1005
    %v1007 = vrot.slane %v24, %v1006
    %v1008 = vmul.f32 %v760, %v1007
    %v1009 = vmul.f32 %v761, %v1007
    %v1010 = vmul.f32 %v762, %v1007
    %v1011 = vmul.f32 %v763, %v1007
    %v1012 = vmul.f32 %v764, %v1007
    %v1013 = vmul.f32 %v765, %v1007
    %v1014 = vmul.f32 %v766, %v1007
    %v1015 = vmul.f32 %v767, %v1007
    %v1016 = vmul.f32 %v792, %v1007
    %v1017 = vmul.f32 %v793, %v1007
    %v1018 = vmul.f32 %v794, %v1007
    %v1019 = vmul.f32 %v795, %v1007
    %v1020 = vmul.f32 %v796, %v1007
    %v1021 = vmul.f32 %v797, %v1007
    %v1022 = vmul.f32 %v798, %v1007
    %v1023 = vmul.f32 %v799, %v1007
    %v1024 = vadd.f32 %v988, %v1008
    %v1025 = vadd.f32 %v989, %v1009
    %v1026 = vadd.f32 %v990, %v1010
    %v1027 = vadd.f32 %v991, %v1011
    %v1028 = vadd.f32 %v992, %v1012
    %v1029 = vadd.f32 %v993, %v1013
    %v1030 = vadd.f32 %v994, %v1014
    %v1031 = vadd.f32 %v995, %v1015
    %v1032 = vadd.f32 %v996, %v1016
    %v1033 = vadd.f32 %v997, %v1017
    %v1034 = vadd.f32 %v998, %v1018
    %v1035 = vadd.f32 %v999, %v1019
    %v1036 = vadd.f32 %v1000, %v1020
    %v1037 = vadd.f32 %v1001, %v1021
    %v1038 = vadd.f32 %v1002, %v1022
    %v1039 = vadd.f32 %v1003, %v1023
    %v1040 = vlaneseq
    %v1041 = vshrl.u32 %v1040, 7
    %v1042 = vsub.s32 0, %v1041
    %v1043 = vrot.slane %v24, %v1042
    %v1044 = vmul.f32 %v1043, 0.0
    %v1045 = vmul.f32 %v861, %v1043
    %v1046 = vmul.f32 %v862, %v1043
    %v1047 = vmul.f32 %v863, %v1043
    %v1048 = vmul.f32 %v864, %v1043
    %v1049 = vmul.f32 %v865, %v1043
    %v1050 = vmul.f32 %v866, %v1043
    %v1051 = vmul.f32 %v867, %v1043
    %v1052 = vmul.f32 %v869, %v1043
    %v1053 = vmul.f32 %v870, %v1043
    %v1054 = vmul.f32 %v871, %v1043
    %v1055 = vmul.f32 %v872, %v1043
    %v1056 = vmul.f32 %v873, %v1043
    %v1057 = vmul.f32 %v874, %v1043
    %v1058 = vmul.f32 %v875, %v1043
    %v1059 = vadd.f32 %v1024, %v1044
    %v1060 = vadd.f32 %v1025, %v1045
    %v1061 = vadd.f32 %v1026, %v1046
    %v1062 = vadd.f32 %v1027, %v1047
    %v1063 = vadd.f32 %v1028, %v1048
    %v1064 = vadd.f32 %v1029, %v1049
    %v1065 = vadd.f32 %v1030, %v1050
    %v1066 = vadd.f32 %v1031, %v1051
    %v1067 = vadd.f32 %v1032, %v1044
    %v1068 = vadd.f32 %v1033, %v1052
    %v1069 = vadd.f32 %v1034, %v1053
    %v1070 = vadd.f32 %v1035, %v1054
    %v1071 = vadd.f32 %v1036, %v1055
    %v1072 = vadd.f32 %v1037, %v1056
    %v1073 = vadd.f32 %v1038, %v1057
    %v1074 = vadd.f32 %v1039, %v1058
    %v1075 = vlaneseq
    %v1076 = vshrl.u32 %v1075, 7
    %v1077 = vsub.s32 6, %v1076
    %v1078 = vrot.slane %v24, %v1077
    %v1079 = vmul.f32 %v861, %v1078
    %v1080 = vmul.f32 %v862, %v1078
    %v1081 = vmul.f32 %v863, %v1078
    %v1082 = vmul.f32 %v864, %v1078
    %v1083 = vmul.f32 %v865, %v1078
    %v1084 = vmul.f32 %v866, %v1078
    %v1085 = vmul.f32 %v867, %v1078
    %v1086 = vmul.f32 %v868, %v1078
    %v1087 = vmul.f32 %v869, %v1078
    %v1088 = vmul.f32 %v870, %v1078
    %v1089 = vmul.f32 %v871, %v1078
    %v1090 = vmul.f32 %v872, %v1078
    %v1091 = vmul.f32 %v873, %v1078
    %v1092 = vmul.f32 %v874, %v1078
    %v1093 = vmul.f32 %v875, %v1078
    %v1094 = vmul.f32 %v876, %v1078
    %v1095 = vadd.f32 %v1059, %v1079
    %v1096 = vadd.f32 %v1060, %v1080
    %v1097 = vadd.f32 %v1061, %v1081
    %v1098 = vadd.f32 %v1062, %v1082
    %v1099 = vadd.f32 %v1063, %v1083
    %v1100 = vadd.f32 %v1064, %v1084
    %v1101 = vadd.f32 %v1065, %v1085
    %v1102 = vadd.f32 %v1066, %v1086
    %v1103 = vadd.f32 %v1067, %v1087
    %v1104 = vadd.f32 %v1068, %v1088
    %v1105 = vadd.f32 %v1069, %v1089
    %v1106 = vadd.f32 %v1070, %v1090
    %v1107 = vadd.f32 %v1071, %v1091
    %v1108 = vadd.f32 %v1072, %v1092
    %v1109 = vadd.f32 %v1073, %v1093
    %v1110 = vadd.f32 %v1074, %v1094
    %v1111 = vlaneseq
    %v1112 = vshrl.u32 %v1111, 7
    %v1113 = vsub.s32 2, %v1112
    %v1114 = vrot.slane %v24, %v1113
    %v1115 = vmul.f32 %v1114, 0.0
    %v1116 = vmul.f32 %v768, %v1114
    %v1117 = vmul.f32 %v769, %v1114
    %v1118 = vmul.f32 %v770, %v1114
    %v1119 = vmul.f32 %v771, %v1114
    %v1120 = vmul.f32 %v772, %v1114
    %v1121 = vmul.f32 %v773, %v1114
    %v1122 = vmul.f32 %v774, %v1114
    %v1123 = vmul.f32 %v800, %v1114
    %v1124 = vmul.f32 %v801, %v1114
    %v1125 = vmul.f32 %v802, %v1114
    %v1126 = vmul.f32 %v803, %v1114
    %v1127 = vmul.f32 %v804, %v1114
    %v1128 = vmul.f32 %v805, %v1114
    %v1129 = vmul.f32 %v806, %v1114
    %v1130 = vadd.f32 %v1095, %v1115
    %v1131 = vadd.f32 %v1096, %v1116
    %v1132 = vadd.f32 %v1097, %v1117
    %v1133 = vadd.f32 %v1098, %v1118
    %v1134 = vadd.f32 %v1099, %v1119
    %v1135 = vadd.f32 %v1100, %v1120
    %v1136 = vadd.f32 %v1101, %v1121
    %v1137 = vadd.f32 %v1102, %v1122
    %v1138 = vadd.f32 %v1103, %v1115
    %v1139 = vadd.f32 %v1104, %v1123
    %v1140 = vadd.f32 %v1105, %v1124
    %v1141 = vadd.f32 %v1106, %v1125
    %v1142 = vadd.f32 %v1107, %v1126
    %v1143 = vadd.f32 %v1108, %v1127
    %v1144 = vadd.f32 %v1109, %v1128
    %v1145 = vadd.f32 %v1110, %v1129
    %v1146 = vlaneseq
    %v1147 = vshrl.u32 %v1146, 7
    %v1148 = vsub.s32 0, %v1147
    %v1149 = vrot.slane %v25, %v1148
    %v1150 = vmul.f32 %v768, %v1149
    %v1151 = vmul.f32 %v769, %v1149
    %v1152 = vmul.f32 %v770, %v1149
    %v1153 = vmul.f32 %v771, %v1149
    %v1154 = vmul.f32 %v772, %v1149
    %v1155 = vmul.f32 %v773, %v1149
    %v1156 = vmul.f32 %v774, %v1149
    %v1157 = vmul.f32 %v775, %v1149
    %v1158 = vmul.f32 %v800, %v1149
    %v1159 = vmul.f32 %v801, %v1149
    %v1160 = vmul.f32 %v802, %v1149
    %v1161 = vmul.f32 %v803, %v1149
    %v1162 = vmul.f32 %v804, %v1149
    %v1163 = vmul.f32 %v805, %v1149
    %v1164 = vmul.f32 %v806, %v1149
    %v1165 = vmul.f32 %v807, %v1149
    %v1166 = vadd.f32 %v1130, %v1150
    %v1167 = vadd.f32 %v1131, %v1151
    %v1168 = vadd.f32 %v1132, %v1152
    %v1169 = vadd.f32 %v1133, %v1153
    %v1170 = vadd.f32 %v1134, %v1154
    %v1171 = vadd.f32 %v1135, %v1155
    %v1172 = vadd.f32 %v1136, %v1156
    %v1173 = vadd.f32 %v1137, %v1157
    %v1174 = vadd.f32 %v1138, %v1158
    %v1175 = vadd.f32 %v1139, %v1159
    %v1176 = vadd.f32 %v1140, %v1160
    %v1177 = vadd.f32 %v1141, %v1161
    %v1178 = vadd.f32 %v1142, %v1162
    %v1179 = vadd.f32 %v1143, %v1163
    %v1180 = vadd.f32 %v1144, %v1164
    %v1181 = vadd.f32 %v1145, %v1165
    %v1182 = vlaneseq
    %v1183 = vshrl.u32 %v1182, 7
    %v1184 = vsub.s32 1, %v1183
    %v1185 = vrot.slane %v25, %v1184
    %v1186 = vadd.f32 %v1166, %v1185
    %v1187 = vadd.f32 %v1167, %v1185
    %v1188 = vadd.f32 %v1168, %v1185
    %v1189 = vadd.f32 %v1169, %v1185
    %v1190 = vadd.f32 %v1170, %v1185
    %v1191 = vadd.f32 %v1171, %v1185
    %v1192 = vadd.f32 %v1172, %v1185
    %v1193 = vadd.f32 %v1173, %v1185
    %v1194 = vadd.f32 %v1174, %v1185
    %v1195 = vadd.f32 %v1175, %v1185
    %v1196 = vadd.f32 %v1176, %v1185
    %v1197 = vadd.f32 %v1177, %v1185
    %v1198 = vadd.f32 %v1178, %v1185
    %v1199 = vadd.f32 %v1179, %v1185
    %v1200 = vadd.f32 %v1180, %v1185
    %v1201 = vadd.f32 %v1181, %v1185
    %v1202 = vmax.f32 %v1186, 0.0
    %v1203 = vmax.f32 %v1187, 0.0
    %v1204 = vmax.f32 %v1188, 0.0
    %v1205 = vmax.f32 %v1189, 0.0
    %v1206 = vmax.f32 %v1190, 0.0
    %v1207 = vmax.f32 %v1191, 0.0
    %v1208 = vmax.f32 %v1192, 0.0
    %v1209 = vmax.f32 %v1193, 0.0
    %v1210 = vmax.f32 %v1194, 0.0
    %v1211 = vmax.f32 %v1195, 0.0
    %v1212 = vmax.f32 %v1196, 0.0
    %v1213 = vmax.f32 %v1197, 0.0
    %v1214 = vmax.f32 %v1198, 0.0
    %v1215 = vmax.f32 %v1199, 0.0
    %v1216 = vmax.f32 %v1200, 0.0
    %v1217 = vmax.f32 %v1201, 0.0
    %v1218 = vmin.f32 %v1202, 6.0
    %v1219 = vmin.f32 %v1203, 6.0
    %v1220 = vmin.f32 %v1204, 6.0
    %v1221 = vmin.f32 %v1205, 6.0
    %v1222 = vmin.f32 %v1206, 6.0
    %v1223 = vmin.f32 %v1207, 6.0
    %v1224 = vmin.f32 %v1208, 6.0
    %v1225 = vmin.f32 %v1209, 6.0
    %v1226 = vmin.f32 %v1210, 6.0
    %v1227 = vmin.f32 %v1211, 6.0
    %v1228 = vmin.f32 %v1212, 6.0
    %v1229 = vmin.f32 %v1213, 6.0
    %v1230 = vmin.f32 %v1214, 6.0
    %v1231 = vmin.f32 %v1215, 6.0
    %v1232 = vmin.f32 %v1216, 6.0
    %v1233 = vmin.f32 %v1217, 6.0
    %v1234 = vld [vmem:[%s4] sm:$0xff]
    %v1235 = vld [vmem:[%s4 + $0x8] sm:$0xff]
    %v1236 = vld [vmem:[%s4 + $0x10] sm:$0xff]
    %v1237 = vld [vmem:[%s4 + $0x18] sm:$0xff]
    %v1238 = vld [vmem:[%s4 + $0x20] sm:$0xff]
    %v1239 = vld [vmem:[%s4 + $0x28] sm:$0xff]
    %v1240 = vld [vmem:[%s4 + $0x30] sm:$0xff]
    %v1241 = vld [vmem:[%s4 + $0x38] sm:$0xff]
    %v1242 = vld [vmem:[%s4 + $0x40] sm:$0xff]
    %v1243 = vld [vmem:[%s4 + $0x48] sm:$0xff]
    %v1244 = vld [vmem:[%s4 + $0x50] sm:$0xff]
    %v1245 = vld [vmem:[%s4 + $0x58] sm:$0xff]
    %v1246 = vld [vmem:[%s4 + $0x60] sm:$0xff]
    %v1247 = vld [vmem:[%s4 + $0x68] sm:$0xff]
    %v1248 = vld [vmem:[%s4 + $0x70] sm:$0xff]
    %v1249 = vld [vmem:[%s4 + $0x78] sm:$0xff]
    %v1250 = vld [vmem:[%s5] sm:$0x1]
    %v1252 = vlaneseq
    %v1253 = vshrl.u32 %v1252, 7
    %v1254 = vsub.s32 0, %v1253
    %v1255 = vrot.slane %v1250, %v1254
    %1257 = vmatprep.subr.mxu0 0.0
    %1258 = vmatpush1.msra.mxu0 %v1234
    %1259 = vmatprep.subr.mxu0 0.0
    %1260 = vmatpush1.msra.mxu0 %v1235
    %1261 = vmatprep.subr.mxu0 0.0
    %1262 = vmatpush1.msra.mxu0 %v1236
    %1263 = vmatprep.subr.mxu0 0.0
    %1264 = vmatpush1.msra.mxu0 %v1237
    %1265 = vmatprep.subr.mxu0 0.0
    %1266 = vmatpush1.msra.mxu0 %v1238
    %1267 = vmatprep.subr.mxu0 0.0
    %1268 = vmatpush1.msra.mxu0 %v1239
    %1269 = vmatprep.subr.mxu0 0.0
    %1270 = vmatpush1.msra.mxu0 %v1240
    %1271 = vmatprep.subr.mxu0 0.0
    %1272 = vmatpush1.msra.mxu0 %v1241
    %1273 = vmatprep.subr.mxu0 0.0
    %1274 = vmatpush1.msra.mxu0 %v1242
    %1275 = vmatprep.subr.mxu0 0.0
    %1276 = vmatpush1.msra.mxu0 %v1243
    %1277 = vmatprep.subr.mxu0 0.0
    %1278 = vmatpush1.msra.mxu0 %v1244
    %1279 = vmatprep.subr.mxu0 0.0
    %1280 = vmatpush1.msra.mxu0 %v1245
    %1281 = vmatprep.subr.mxu0 0.0
    %1282 = vmatpush1.msra.mxu0 %v1246
    %1283 = vmatprep.subr.mxu0 0.0
    %1284 = vmatpush1.msra.mxu0 %v1247
    %1285 = vmatprep.subr.mxu0 0.0
    %1286 = vmatpush1.msra.mxu0 %v1248
    %1287 = vmatprep.subr.mxu0 0.0
    %1288 = vmatpush1.msra.mxu0 %v1249
    %1289 = vmatprep.subr.mxu0 0.0
    %1290 = vmatpush1.msra.mxu0 0.0
    %1291 = vmatprep.subr.mxu0 0.0
    %1292 = vmatpush1.msra.mxu0 0.0
    %1293 = vmatprep.subr.mxu0 0.0
    %1294 = vmatpush1.msra.mxu0 0.0
    %1295 = vmatprep.subr.mxu0 0.0
    %1296 = vmatpush1.msra.mxu0 0.0
    %1297 = vmatprep.subr.mxu0 0.0
    %1298 = vmatpush1.msra.mxu0 0.0
    %1299 = vmatprep.subr.mxu0 0.0
    %1300 = vmatpush1.msra.mxu0 0.0
    %1301 = vmatprep.subr.mxu0 0.0
    %1302 = vmatpush1.msra.mxu0 0.0
    %1303 = vmatprep.subr.mxu0 0.0
    %1304 = vmatpush1.msra.mxu0 0.0
    %1305 = vmatprep.subr.mxu0 0.0
    %1306 = vmatpush1.msra.mxu0 0.0
    %1307 = vmatprep.subr.mxu0 0.0
    %1308 = vmatpush1.msra.mxu0 0.0
    %1309 = vmatprep.subr.mxu0 0.0
    %1310 = vmatpush1.msra.mxu0 0.0
    %1311 = vmatprep.subr.mxu0 0.0
    %1312 = vmatpush1.msra.mxu0 0.0
    %1313 = vmatprep.subr.mxu0 0.0
    %1314 = vmatpush1.msra.mxu0 0.0
    %1315 = vmatprep.subr.mxu0 0.0
    %1316 = vmatpush1.msra.mxu0 0.0
    %1317 = vmatprep.subr.mxu0 0.0
    %1318 = vmatpush1.msra.mxu0 0.0
    %1319 = vmatprep.subr.mxu0 0.0
    %1320 = vmatpush1.msra.mxu0 0.0
    %1321 = vmatprep.mubr.f32.mxu0 0.0
    %1322 = vmatmul.mubr.f32.gmra.mrb[0].mxu0 %v1218
    %v1323 = vpop.f32.mrb[0].mxu0
    %v1324 = vadd.f32 %v1255, %v1323
    %v1325 = vpop.f32.mrb[0].mxu0
    %1326 = vmatprep.mubr.f32.mxu0 0.0
    %1327 = vmatmul.mubr.f32.gmra.mrb[0].mxu0 %v1219
    %v1328 = vpop.f32.mrb[0].mxu0
    %v1329 = vadd.f32 %v1255, %v1328
    %v1330 = vpop.f32.mrb[0].mxu0
    %1331 = vmatprep.mubr.f32.mxu0 0.0
    %1332 = vmatmul.mubr.f32.gmra.mrb[0].mxu0 %v1220
    %v1333 = vpop.f32.mrb[0].mxu0
    %v1334 = vadd.f32 %v1255, %v1333
    %v1335 = vpop.f32.mrb[0].mxu0
    %1336 = vmatprep.mubr.f32.mxu0 0.0
    %1337 = vmatmul.mubr.f32.gmra.mrb[0].mxu0 %v1221
    %v1338 = vpop.f32.mrb[0].mxu0
    %v1339 = vadd.f32 %v1255, %v1338
    %v1340 = vpop.f32.mrb[0].mxu0
    %1341 = vmatprep.mubr.f32.mxu0 0.0
    %1342 = vmatmul.mubr.f32.gmra.mrb[0].mxu0 %v1222
    %v1343 = vpop.f32.mrb[0].mxu0
    %v1344 = vadd.f32 %v1255, %v1343
    %v1345 = vpop.f32.mrb[0].mxu0
    %1346 = vmatprep.mubr.f32.mxu0 0.0
    %1347 = vmatmul.mubr.f32.gmra.mrb[0].mxu0 %v1223
    %v1348 = vpop.f32.mrb[0].mxu0
    %v1349 = vadd.f32 %v1255, %v1348
    %v1350 = vpop.f32.mrb[0].mxu0
    %1351 = vmatprep.mubr.f32.mxu0 0.0
    %1352 = vmatmul.mubr.f32.gmra.mrb[0].mxu0 %v1224
    %v1353 = vpop.f32.mrb[0].mxu0
    %v1354 = vadd.f32 %v1255, %v1353
    %v1355 = vpop.f32.mrb[0].mxu0
    %1356 = vmatprep.mubr.f32.mxu0 0.0
    %1357 = vmatmul.mubr.f32.gmra.mrb[0].mxu0 %v1225
    %v1358 = vpop.f32.mrb[0].mxu0
    %v1359 = vadd.f32 %v1255, %v1358
    %v1360 = vpop.f32.mrb[0].mxu0
    %1361 = vmatprep.mubr.f32.mxu0 0.0
    %1362 = vmatmul.mubr.f32.gmra.mrb[0].mxu0 %v1226
    %v1363 = vpop.f32.mrb[0].mxu0
    %v1364 = vadd.f32 %v1255, %v1363
    %v1365 = vpop.f32.mrb[0].mxu0
    %1366 = vmatprep.mubr.f32.mxu0 0.0
    %1367 = vmatmul.mubr.f32.gmra.mrb[0].mxu0 %v1227
    %v1368 = vpop.f32.mrb[0].mxu0
    %v1369 = vadd.f32 %v1255, %v1368
    %v1370 = vpop.f32.mrb[0].mxu0
    %1371 = vmatprep.mubr.f32.mxu0 0.0
    %1372 = vmatmul.mubr.f32.gmra.mrb[0].mxu0 %v1228
    %v1373 = vpop.f32.mrb[0].mxu0
    %v1374 = vadd.f32 %v1255, %v1373
    %v1375 = vpop.f32.mrb[0].mxu0
    %1376 = vmatprep.mubr.f32.mxu0 0.0
    %1377 = vmatmul.mubr.f32.gmra.mrb[0].mxu0 %v1229
    %v1378 = vpop.f32.mrb[0].mxu0
    %v1379 = vadd.f32 %v1255, %v1378
    %v1380 = vpop.f32.mrb[0].mxu0
    %1381 = vmatprep.mubr.f32.mxu0 0.0
    %1382 = vmatmul.mubr.f32.gmra.mrb[0].mxu0 %v1230
    %v1383 = vpop.f32.mrb[0].mxu0
    %v1384 = vadd.f32 %v1255, %v1383
    %v1385 = vpop.f32.mrb[0].mxu0
    %1386 = vmatprep.mubr.f32.mxu0 0.0
    %1387 = vmatmul.mubr.f32.gmra.mrb[0].mxu0 %v1231
    %v1388 = vpop.f32.mrb[0].mxu0
    %v1389 = vadd.f32 %v1255, %v1388
    %v1390 = vpop.f32.mrb[0].mxu0
    %1391 = vmatprep.mubr.f32.mxu0 0.0
    %1392 = vmatmul.mubr.f32.gmra.mrb[0].mxu0 %v1232
    %v1393 = vpop.f32.mrb[0].mxu0
    %v1394 = vadd.f32 %v1255, %v1393
    %v1395 = vpop.f32.mrb[0].mxu0
    %1396 = vmatprep.mubr.f32.mxu0 0.0
    %1397 = vmatmul.mubr.f32.gmra.mrb[0].mxu0 %v1233
    %v1398 = vpop.f32.mrb[0].mxu0
    %v1399 = vadd.f32 %v1255, %v1398
    %v1400 = vpop.f32.mrb[0].mxu0
    %1401 = vdwg.mxu0
    %1402 = vst [vmem:[#allocation2] sm:$0xff] %v1324
    %1403 = vst [vmem:[#allocation2 + $0x8] sm:$0xff] %v1329
    %1404 = vst [vmem:[#allocation2 + $0x10] sm:$0xff] %v1334
    %1405 = vst [vmem:[#allocation2 + $0x18] sm:$0xff] %v1339
    %1406 = vst [vmem:[#allocation2 + $0x20] sm:$0xff] %v1344
    %1407 = vst [vmem:[#allocation2 + $0x28] sm:$0xff] %v1349
    %1408 = vst [vmem:[#allocation2 + $0x30] sm:$0xff] %v1354
    %1409 = vst [vmem:[#allocation2 + $0x38] sm:$0xff] %v1359
    %1410 = vst [vmem:[#allocation2 + $0x40] sm:$0xff] %v1364
    %1411 = vst [vmem:[#allocation2 + $0x48] sm:$0xff] %v1369
    %1412 = vst [vmem:[#allocation2 + $0x50] sm:$0xff] %v1374
    %1413 = vst [vmem:[#allocation2 + $0x58] sm:$0xff] %v1379
    %1414 = vst [vmem:[#allocation2 + $0x60] sm:$0xff] %v1384
    %1415 = vst [vmem:[#allocation2 + $0x68] sm:$0xff] %v1389
    %1416 = vst [vmem:[#allocation2 + $0x70] sm:$0xff] %v1394
    %1417 = vst [vmem:[#allocation2 + $0x78] sm:$0xff] %v1399
    // Predicated region
    $region26: #{tpu_custom_call.1} parent=1 // pred_check
      _
    $region27: #{tpu_custom_call.1} parent=1 // pred_check_branch
      %1419 = sbr.rel (0) target = $region29
    $region28: #{tpu_custom_call.1} parent=1 // pred_region
      %s1421 = ssub.s32 2048, 2048
      %1422 = vsyncadd [#allocation3], %s1421
      %s1423 = sshll.u32 [#allocation2], 4
      %s1424 = int_to_ptr.vmem [resolvable:$true] %s1423
      %1429 = dma.vmem_to_hbm [thread:$0]  %s1424, 2048, %s6, [#allocation3], 128, 128, 8
    $region29: #{tpu_custom_call.1} parent=1 // pred_fallthru
      _
    // Predicated region
    $region30: #{tpu_custom_call.1} parent=1 // pred_check
      _
    $region31: #{tpu_custom_call.1} parent=1 // pred_check_branch
      %1431 = sbr.rel (0) target = $region33
    $region32: #{tpu_custom_call.1} parent=1 // pred_region
      %1432 = dma.done [#allocation3], 2048
    $region33: #{tpu_custom_call.1} parent=1 // pred_fallthru
      _
    %1433 = vsyncpa [#allocation3], 1

</llo_original>
